<compile_context>
chip_gen: v7x
topology: tpu7x:2x2x1
jax: 0.10.0
libtpu: 0.0.40
codegen_flags: <defaults>
</compile_context>

<pallas_src>
import jax
import jax.numpy as jnp
import numpy as np
from jax import lax
from jax.experimental import pallas as pl
from jax.experimental.pallas import tpu as pltpu

# Matmul-operand dtype (MXU).  f32 accumulation + f32 elementwise everywhere else.
# Set to jnp.float32 to recover exact-f32 semantics.
MXU_OPERAND_DTYPE = jnp.bfloat16


# ----------------------------- Fused Pallas kernel --------------------------------

def _make_fused_kernel(n_layers, T, B, H, O, mxu_dtype):
    """Whole forward (all LSTM layers + FC + ReLU), single invocation, everything in VMEM."""
    G = 4 * H

    def kernel(*refs):
        x_ref = refs[0]                                   # (T*B, D) time-major flattened input
        layer_refs = refs[1:1 + 3 * n_layers]             # per layer: w_ih_t, w_hh_t, bias
        fcw_ref, fcb_ref, o_ref, proj_ref, act_ref = refs[1 + 3 * n_layers:]
        # fcw_ref: (H, O) f32, fcb_ref: (1, O) f32, o_ref: (T*B, O)
        # proj_ref: (T*B, 4H) f32 scratch, act_ref: (T*B, H) f32 scratch

        for l in range(n_layers):
            # Hoisted once per layer: weights/bias become vreg-resident values.
            w_ih = layer_refs[3 * l][...]                 # (D_l, 4H) mxu dtype, i/f/o cols *0.5
            w_hh = layer_refs[3 * l + 1][...]             # (H,  4H) mxu dtype, i/f/o cols *0.5
            b = layer_refs[3 * l + 2][...]                # (1,  4H) f32,       i/f/o cols *0.5

            # Batched input projection for the whole sequence: ONE MXU op, completely off
            # the recurrent critical path.
            seq_in = (x_ref[...] if l == 0 else act_ref[...]).astype(mxu_dtype)
            proj_ref[...] = (
                jnp.dot(seq_in, w_ih, preferred_element_type=jnp.float32) + b
            )

            h = jnp.zeros((B, H), jnp.float32)
            c = jnp.zeros((B, H), jnp.float32)

            # Fully unrolled recurrence (T static & small): only h @ W_hh + elementwise.
            for t in range(T):
                gx = proj_ref[t * B:(t + 1) * B, :]       # static VMEM load, not on h-chain
                gates = gx + jnp.dot(h.astype(mxu_dtype), w_hh,
                                     preferred_element_type=jnp.float32)   # (B, 4H) f32

                # Single full-tile tanh covers all 4 gates (i/f/o lanes pre-scaled by 0.5
                # at pack time): sigmoid(z) = 0.5 * tanh(z/2) + 0.5.
                th = jnp.tanh(gates)
                sg = 0.5 * th + 0.5
                i_g = sg[:, 0 * H:1 * H]
                f_g = sg[:, 1 * H:2 * H]
                g_g = th[:, 2 * H:3 * H]
                o_g = sg[:, 3 * H:4 * H]

                c = f_g * c + i_g * g_g
                h = o_g * jnp.tanh(c)

                # Assemble this layer's output sequence (off the critical path).
                act_ref[t * B:(t + 1) * B, :] = h
                # inter-layer LSTM dropout(0.2): identity in eval mode

        # dropout(0.1): identity in eval mode.  Single batched FC + ReLU over the whole
        # top-layer sequence (kept in f32 for output precision), one dense store.
        y = jnp.dot(act_ref[...], fcw_ref[...],
                    preferred_element_type=jnp.float32) + fcb_ref[...]
        o_ref[...] = jnp.maximum(y, 0.0).astype(o_ref.dtype)

    return kernel


# ------------------------------ Wrapper --------------------------------------

def _full_spec(a):
    zeros = (0,) * a.ndim
    return pl.BlockSpec(a.shape, lambda *_: zeros)


@jax.jit
def lstm_predictor_forward(x, packed):
    """x: (B, T, input_dim) batch_first, like the PyTorch module. Returns squeezed output."""
    B, T, D = x.shape
    layers = packed["layers"]
    n_layers = len(layers)
    H = layers[0]["w_hh_t"].shape[0]
    fc_w, fc_b = packed["fc_w"], packed["fc_b"]           # (H, O) f32, (1, O) f32
    O = fc_b.shape[1]

    # Time-major flattened layout (T*B, D): tiny XLA-side op, keeps the kernel 2-D throughout.
    x2d = jnp.transpose(x, (1, 0, 2)).reshape(T * B, D)

    args = [x2d]
    for lp in layers:
        args += [lp["w_ih_t"], lp["w_hh_t"], lp["b"]]
    args += [fc_w, fc_b]

    out2d = pl.pallas_call(
        _make_fused_kernel(n_layers, T, B, H, O, MXU_OPERAND_DTYPE),
        out_shape=jax.ShapeDtypeStruct((T * B, O), x.dtype),
        in_specs=[_full_spec(a) for a in args],
        out_specs=pl.BlockSpec((T * B, O), lambda *_: (0, 0)),
        scratch_shapes=[
            pltpu.VMEM((T * B, 4 * H), jnp.float32),      # batched input projection
            pltpu.VMEM((T * B, H), jnp.float32),          # per-layer output sequence
        ],
    )(*args)

    out = jnp.transpose(out2d.reshape(T, B, O), (1, 0, 2))   # (B, T, O) batch_first
    return jnp.squeeze(out)  # matches torch .squeeze()


# ---------------------------- Params: init / pack / reference ---------------------------

def init_params(key, input_dim, hidden_dim, output_dim, n_layers):
    """PyTorch-style uniform(-1/sqrt(H), 1/sqrt(H)) init, deterministic. Torch layouts."""
    bound = 1.0 / np.sqrt(hidden_dim)
    layers = []
    for l in range(n_layers):
        d_in = input_dim if l == 0 else hidden_dim
        key, k1, k2, k3, k4 = jax.random.split(key, 5)
        layers.append({
            "w_ih": jax.random.uniform(k1, (4 * hidden_dim, d_in), jnp.float32, -bound, bound),
            "w_hh": jax.random.uniform(k2, (4 * hidden_dim, hidden_dim), jnp.float32, -bound, bound),
            "b_ih": jax.random.uniform(k3, (4 * hidden_dim,), jnp.float32, -bound, bound),
            "b_hh": jax.random.uniform(k4, (4 * hidden_dim,), jnp.float32, -bound, bound),
        })
    key, k5, k6 = jax.random.split(key, 3)
    fc_w = jax.random.uniform(k5, (output_dim, hidden_dim), jnp.float32, -bound, bound)
    fc_b = jax.random.uniform(k6, (output_dim,), jnp.float32, -bound, bound)
    return {"lstm": layers, "fc_w": fc_w, "fc_b": fc_b}


def pack_params(raw, mxu_dtype=MXU_OPERAND_DTYPE):
    """Torch-layout params -> kernel layouts (once, outside jit).

    The i/f/o gate columns of W_ih, W_hh and the combined bias are pre-scaled by 0.5 so the
    kernel needs a single full-tile tanh (sigmoid(z) = 0.5*tanh(z/2) + 0.5); scaling by 0.5 is
    exact in both f32 and bf16, so numerics are unchanged.  Matmul weights are stored in the
    MXU operand dtype; the bias (added after f32 accumulation) and FC stay f32.
    """
    layers = []
    for lp in raw["lstm"]:
        H = lp["w_hh"].shape[1]
        col_scale = np.ones((1, 4 * H), np.float32)
        col_scale[:, 0:2 * H] = 0.5          # i, f gates
        col_scale[:, 3 * H:4 * H] = 0.5      # o gate   (g gate stays unscaled -> tanh)
        col_scale = jnp.asarray(col_scale)
        layers.append({
            "w_ih_t": (lp["w_ih"].T * col_scale).astype(mxu_dtype),   # (d_in, 4H)
            "w_hh_t": (lp["w_hh"].T * col_scale).astype(mxu_dtype),   # (H, 4H)
            "b": (lp["b_ih"] + lp["b_hh"])[None, :] * col_scale,      # (1, 4H) f32
        })
    return {"layers": layers,
            "fc_w": raw["fc_w"].T,              # (H, O) f32
            "fc_b": raw["fc_b"][None, :]}       # (1, O) f32


def reference_forward(x, raw, mxu_dtype=jnp.float32):
    """Pure-JAX reference mirroring torch nn.LSTM (gate order i,f,g,o) + Linear + ReLU.

    `mxu_dtype` optionally applies the same matmul-operand rounding as the kernel
    (bf16 operands, f32 accumulation); float32 gives the exact torch semantics.
    """
    def q(a):
        return a.astype(mxu_dtype).astype(jnp.float32)

    B, T, _ = x.shape
    h_seq = x
    for lp in raw["lstm"]:
        H = lp["w_hh"].shape[1]
        w_ih_t, w_hh_t = q(lp["w_ih"].T), q(lp["w_hh"].T)
        bias = lp["b_ih"] + lp["b_hh"]

        def step(carry, x_t, w_ih_t=w_ih_t, w_hh_t=w_hh_t, bias=bias, H=H):
            h, c = carry
            gates = q(x_t) @ w_ih_t + q(h) @ w_hh_t + bias
            i = jax.nn.sigmoid(gates[:, 0 * H:1 * H])
            f = jax.nn.sigmoid(gates[:, 1 * H:2 * H])
            g = jnp.tanh(gates[:, 2 * H:3 * H])
            o = jax.nn.sigmoid(gates[:, 3 * H:4 * H])
            c = f * c + i * g
            h = o * jnp.tanh(c)
            return (h, c), h

        init = (jnp.zeros((B, H), jnp.float32), jnp.zeros((B, H), jnp.float32))
        _, hs = lax.scan(step, init, jnp.transpose(h_seq, (1, 0, 2)))
        h_seq = jnp.transpose(hs, (1, 0, 2))
    out = h_seq @ raw["fc_w"].T + raw["fc_b"]
    return jnp.squeeze(jnp.maximum(out, 0.0))


# ----------------------------------- Main --------------------------------------

if __name__ == "__main__":
    input_dim, hidden_dim, output_dim, n_layers = 8, 32, 1, 2
    B, T = 8, 8   # B=8 keeps every per-step sublane slice/store tile-aligned

    key = jax.random.PRNGKey(0)
    key_x, key_p = jax.random.split(key)
    x = jax.random.normal(key_x, (B, T, input_dim), jnp.float32)
    raw = init_params(key_p, input_dim, hidden_dim, output_dim, n_layers)
    packed = pack_params(raw)

    out = lstm_predictor_forward(x, packed)
    out = jax.block_until_ready(out)
    assert out.shape == (B, T), out.shape

    # Tight check vs. a reference using the same bf16 MXU-operand rounding as the kernel.
    ref_q = reference_forward(x, raw, mxu_dtype=MXU_OPERAND_DTYPE)
    np.testing.assert_allclose(np.asarray(out), np.asarray(ref_q), rtol=1e-3, atol=1e-3)

    # Loose sanity check vs. the exact-f32 reference (bounds bf16 operand quantization).
    ref_f32 = reference_forward(x, raw, mxu_dtype=jnp.float32)
    np.testing.assert_allclose(np.asarray(out), np.asarray(ref_f32), rtol=5e-2, atol=5e-2)

    print("KERNEL_OK")
</pallas_src>

<mosaic_0001>
module attributes {stable_mosaic.version = 11 : i64} {
  func.func @kernel(%arg0: memref<64x8xf32, #tpu.memory_space<vmem>>, %arg1: memref<8x128xbf16, #tpu.memory_space<vmem>>, %arg2: memref<32x128xbf16, #tpu.memory_space<vmem>>, %arg3: memref<1x128xf32, #tpu.memory_space<vmem>>, %arg4: memref<32x128xbf16, #tpu.memory_space<vmem>>, %arg5: memref<32x128xbf16, #tpu.memory_space<vmem>>, %arg6: memref<1x128xf32, #tpu.memory_space<vmem>>, %arg7: memref<32x1xf32, #tpu.memory_space<vmem>>, %arg8: memref<1x1xf32, #tpu.memory_space<vmem>>, %arg9: memref<64x1xf32, #tpu.memory_space<vmem>>, %arg10: memref<64x128xf32, #tpu.memory_space<vmem>>, %arg11: memref<64x32xf32, #tpu.memory_space<vmem>>) attributes {dimension_semantics = [], scalar_prefetch = 0 : i64, scratch_operands = 2 : i64, tpu.core_type = #tpu.core_type<tc>} {
    %c0 = arith.constant 0 : index
    %c0_0 = arith.constant 0 : index
    %0 = vector.load %arg1[%c0, %c0_0] : memref<8x128xbf16, #tpu.memory_space<vmem>>, vector<8x128xbf16>
    %c0_1 = arith.constant 0 : index
    %c0_2 = arith.constant 0 : index
    %1 = vector.load %arg2[%c0_1, %c0_2] : memref<32x128xbf16, #tpu.memory_space<vmem>>, vector<32x128xbf16>
    %c0_3 = arith.constant 0 : index
    %c0_4 = arith.constant 0 : index
    %2 = vector.load %arg3[%c0_3, %c0_4] : memref<1x128xf32, #tpu.memory_space<vmem>>, vector<1x128xf32>
    %c0_5 = arith.constant 0 : index
    %c0_6 = arith.constant 0 : index
    %3 = vector.load %arg0[%c0_5, %c0_6] : memref<64x8xf32, #tpu.memory_space<vmem>>, vector<64x8xf32>
    %4 = arith.truncf %3 : vector<64x8xf32> to vector<64x8xbf16>
    %cst = arith.constant dense<0.000000e+00> : vector<64x128xf32>
    %5 = tpu.matmul %4, %0, %cst {dimension_numbers = #tpu.dot_dimension_numbers<[1], [0], [0], [1], [0, 0, 1, 1], [], []>} : vector<64x8xbf16>, vector<8x128xbf16>, vector<64x128xf32> -> vector<64x128xf32>
    %6 = vector.broadcast %2 : vector<1x128xf32> to vector<64x128xf32>
    %7 = arith.addf %5, %6 : vector<64x128xf32>
    %c0_7 = arith.constant 0 : index
    %c0_8 = arith.constant 0 : index
    %8 = vector.load %arg10[%c0_7, %c0_8] : memref<64x128xf32, #tpu.memory_space<vmem>>, vector<64x128xf32>
    tpu.vector_store %arg10[%c0_7, %c0_8], %7 {strides = array<i32>} : memref<64x128xf32, #tpu.memory_space<vmem>>, vector<64x128xf32>,
    %cst_9 = arith.constant 0.000000e+00 : f32
    %9 = vector.broadcast %cst_9 : f32 to vector<8x32xf32>
    %cst_10 = arith.constant 0.000000e+00 : f32
    %10 = vector.broadcast %cst_10 : f32 to vector<8x32xf32>
    %c0_11 = arith.constant 0 : index
    %c0_12 = arith.constant 0 : index
    %11 = vector.load %arg10[%c0_11, %c0_12] : memref<64x128xf32, #tpu.memory_space<vmem>>, vector<8x128xf32>
    %12 = arith.truncf %9 : vector<8x32xf32> to vector<8x32xbf16>
    %cst_13 = arith.constant dense<0.000000e+00> : vector<8x128xf32>
    %13 = tpu.matmul %12, %1, %cst_13 {dimension_numbers = #tpu.dot_dimension_numbers<[1], [0], [0], [1], [0, 0, 1, 1], [], []>} : vector<8x32xbf16>, vector<32x128xbf16>, vector<8x128xf32> -> vector<8x128xf32>
    %14 = arith.addf %11, %13 : vector<8x128xf32>
    %15 = math.tanh %14 : vector<8x128xf32>
    %cst_14 = arith.constant 5.000000e-01 : f32
    %16 = vector.broadcast %cst_14 : f32 to vector<8x128xf32>
    %17 = arith.mulf %16, %15 : vector<8x128xf32>
    %cst_15 = arith.constant 5.000000e-01 : f32
    %18 = vector.broadcast %cst_15 : f32 to vector<8x128xf32>
    %19 = arith.addf %17, %18 : vector<8x128xf32>
    %20 = vector.extract_strided_slice %19 {offsets = [0, 0], sizes = [8, 32], strides = [1, 1]} : vector<8x128xf32> to vector<8x32xf32>
    %21 = vector.extract_strided_slice %19 {offsets = [0, 32], sizes = [8, 32], strides = [1, 1]} : vector<8x128xf32> to vector<8x32xf32>
    %22 = vector.extract_strided_slice %15 {offsets = [0, 64], sizes = [8, 32], strides = [1, 1]} : vector<8x128xf32> to vector<8x32xf32>
    %23 = vector.extract_strided_slice %19 {offsets = [0, 96], sizes = [8, 32], strides = [1, 1]} : vector<8x128xf32> to vector<8x32xf32>
    %24 = arith.mulf %21, %10 : vector<8x32xf32>
    %25 = arith.mulf %20, %22 : vector<8x32xf32>
    %26 = arith.addf %24, %25 : vector<8x32xf32>
    %27 = math.tanh %26 : vector<8x32xf32>
    %28 = arith.mulf %23, %27 : vector<8x32xf32>
    %c0_16 = arith.constant 0 : index
    %c0_17 = arith.constant 0 : index
    %29 = vector.load %arg11[%c0_16, %c0_17] : memref<64x32xf32, #tpu.memory_space<vmem>>, vector<8x32xf32>
    tpu.vector_store %arg11[%c0_16, %c0_17], %28 {strides = array<i32>} : memref<64x32xf32, #tpu.memory_space<vmem>>, vector<8x32xf32>,
    %c8 = arith.constant 8 : index
    %c0_18 = arith.constant 0 : index
    %30 = vector.load %arg10[%c8, %c0_18] : memref<64x128xf32, #tpu.memory_space<vmem>>, vector<8x128xf32>
    %31 = arith.truncf %28 : vector<8x32xf32> to vector<8x32xbf16>
    %cst_19 = arith.constant dense<0.000000e+00> : vector<8x128xf32>
    %32 = tpu.matmul %31, %1, %cst_19 {dimension_numbers = #tpu.dot_dimension_numbers<[1], [0], [0], [1], [0, 0, 1, 1], [], []>} : vector<8x32xbf16>, vector<32x128xbf16>, vector<8x128xf32> -> vector<8x128xf32>
    %33 = arith.addf %30, %32 : vector<8x128xf32>
    %34 = math.tanh %33 : vector<8x128xf32>
    %cst_20 = arith.constant 5.000000e-01 : f32
    %35 = vector.broadcast %cst_20 : f32 to vector<8x128xf32>
    %36 = arith.mulf %35, %34 : vector<8x128xf32>
    %cst_21 = arith.constant 5.000000e-01 : f32
    %37 = vector.broadcast %cst_21 : f32 to vector<8x128xf32>
    %38 = arith.addf %36, %37 : vector<8x128xf32>
    %39 = vector.extract_strided_slice %38 {offsets = [0, 0], sizes = [8, 32], strides = [1, 1]} : vector<8x128xf32> to vector<8x32xf32>
    %40 = vector.extract_strided_slice %38 {offsets = [0, 32], sizes = [8, 32], strides = [1, 1]} : vector<8x128xf32> to vector<8x32xf32>
    %41 = vector.extract_strided_slice %34 {offsets = [0, 64], sizes = [8, 32], strides = [1, 1]} : vector<8x128xf32> to vector<8x32xf32>
    %42 = vector.extract_strided_slice %38 {offsets = [0, 96], sizes = [8, 32], strides = [1, 1]} : vector<8x128xf32> to vector<8x32xf32>
    %43 = arith.mulf %40, %26 : vector<8x32xf32>
    %44 = arith.mulf %39, %41 : vector<8x32xf32>
    %45 = arith.addf %43, %44 : vector<8x32xf32>
    %46 = math.tanh %45 : vector<8x32xf32>
    %47 = arith.mulf %42, %46 : vector<8x32xf32>
    %c8_22 = arith.constant 8 : index
    %c0_23 = arith.constant 0 : index
    %48 = vector.load %arg11[%c8_22, %c0_23] : memref<64x32xf32, #tpu.memory_space<vmem>>, vector<8x32xf32>
    tpu.vector_store %arg11[%c8_22, %c0_23], %47 {strides = array<i32>} : memref<64x32xf32, #tpu.memory_space<vmem>>, vector<8x32xf32>,
    %c16 = arith.constant 16 : index
    %c0_24 = arith.constant 0 : index
    %49 = vector.load %arg10[%c16, %c0_24] : memref<64x128xf32, #tpu.memory_space<vmem>>, vector<8x128xf32>
    %50 = arith.truncf %47 : vector<8x32xf32> to vector<8x32xbf16>
    %cst_25 = arith.constant dense<0.000000e+00> : vector<8x128xf32>
    %51 = tpu.matmul %50, %1, %cst_25 {dimension_numbers = #tpu.dot_dimension_numbers<[1], [0], [0], [1], [0, 0, 1, 1], [], []>} : vector<8x32xbf16>, vector<32x128xbf16>, vector<8x128xf32> -> vector<8x128xf32>
    %52 = arith.addf %49, %51 : vector<8x128xf32>
    %53 = math.tanh %52 : vector<8x128xf32>
    %cst_26 = arith.constant 5.000000e-01 : f32
    %54 = vector.broadcast %cst_26 : f32 to vector<8x128xf32>
    %55 = arith.mulf %54, %53 : vector<8x128xf32>
    %cst_27 = arith.constant 5.000000e-01 : f32
    %56 = vector.broadcast %cst_27 : f32 to vector<8x128xf32>
    %57 = arith.addf %55, %56 : vector<8x128xf32>
    %58 = vector.extract_strided_slice %57 {offsets = [0, 0], sizes = [8, 32], strides = [1, 1]} : vector<8x128xf32> to vector<8x32xf32>
    %59 = vector.extract_strided_slice %57 {offsets = [0, 32], sizes = [8, 32], strides = [1, 1]} : vector<8x128xf32> to vector<8x32xf32>
    %60 = vector.extract_strided_slice %53 {offsets = [0, 64], sizes = [8, 32], strides = [1, 1]} : vector<8x128xf32> to vector<8x32xf32>
    %61 = vector.extract_strided_slice %57 {offsets = [0, 96], sizes = [8, 32], strides = [1, 1]} : vector<8x128xf32> to vector<8x32xf32>
    %62 = arith.mulf %59, %45 : vector<8x32xf32>
    %63 = arith.mulf %58, %60 : vector<8x32xf32>
    %64 = arith.addf %62, %63 : vector<8x32xf32>
    %65 = math.tanh %64 : vector<8x32xf32>
    %66 = arith.mulf %61, %65 : vector<8x32xf32>
    %c16_28 = arith.constant 16 : index
    %c0_29 = arith.constant 0 : index
    %67 = vector.load %arg11[%c16_28, %c0_29] : memref<64x32xf32, #tpu.memory_space<vmem>>, vector<8x32xf32>
    tpu.vector_store %arg11[%c16_28, %c0_29], %66 {strides = array<i32>} : memref<64x32xf32, #tpu.memory_space<vmem>>, vector<8x32xf32>,
    %c24 = arith.constant 24 : index
    %c0_30 = arith.constant 0 : index
    %68 = vector.load %arg10[%c24, %c0_30] : memref<64x128xf32, #tpu.memory_space<vmem>>, vector<8x128xf32>
    %69 = arith.truncf %66 : vector<8x32xf32> to vector<8x32xbf16>
    %cst_31 = arith.constant dense<0.000000e+00> : vector<8x128xf32>
    %70 = tpu.matmul %69, %1, %cst_31 {dimension_numbers = #tpu.dot_dimension_numbers<[1], [0], [0], [1], [0, 0, 1, 1], [], []>} : vector<8x32xbf16>, vector<32x128xbf16>, vector<8x128xf32> -> vector<8x128xf32>
    %71 = arith.addf %68, %70 : vector<8x128xf32>
    %72 = math.tanh %71 : vector<8x128xf32>
    %cst_32 = arith.constant 5.000000e-01 : f32
    %73 = vector.broadcast %cst_32 : f32 to vector<8x128xf32>
    %74 = arith.mulf %73, %72 : vector<8x128xf32>
    %cst_33 = arith.constant 5.000000e-01 : f32
    %75 = vector.broadcast %cst_33 : f32 to vector<8x128xf32>
    %76 = arith.addf %74, %75 : vector<8x128xf32>
    %77 = vector.extract_strided_slice %76 {offsets = [0, 0], sizes = [8, 32], strides = [1, 1]} : vector<8x128xf32> to vector<8x32xf32>
    %78 = vector.extract_strided_slice %76 {offsets = [0, 32], sizes = [8, 32], strides = [1, 1]} : vector<8x128xf32> to vector<8x32xf32>
    %79 = vector.extract_strided_slice %72 {offsets = [0, 64], sizes = [8, 32], strides = [1, 1]} : vector<8x128xf32> to vector<8x32xf32>
    %80 = vector.extract_strided_slice %76 {offsets = [0, 96], sizes = [8, 32], strides = [1, 1]} : vector<8x128xf32> to vector<8x32xf32>
    %81 = arith.mulf %78, %64 : vector<8x32xf32>
    %82 = arith.mulf %77, %79 : vector<8x32xf32>
    %83 = arith.addf %81, %82 : vector<8x32xf32>
    %84 = math.tanh %83 : vector<8x32xf32>
    %85 = arith.mulf %80, %84 : vector<8x32xf32>
    %c24_34 = arith.constant 24 : index
    %c0_35 = arith.constant 0 : index
    %86 = vector.load %arg11[%c24_34, %c0_35] : memref<64x32xf32, #tpu.memory_space<vmem>>, vector<8x32xf32>
    tpu.vector_store %arg11[%c24_34, %c0_35], %85 {strides = array<i32>} : memref<64x32xf32, #tpu.memory_space<vmem>>, vector<8x32xf32>,
    %c32 = arith.constant 32 : index
    %c0_36 = arith.constant 0 : index
    %87 = vector.load %arg10[%c32, %c0_36] : memref<64x128xf32, #tpu.memory_space<vmem>>, vector<8x128xf32>
    %88 = arith.truncf %85 : vector<8x32xf32> to vector<8x32xbf16>
    %cst_37 = arith.constant dense<0.000000e+00> : vector<8x128xf32>
    %89 = tpu.matmul %88, %1, %cst_37 {dimension_numbers = #tpu.dot_dimension_numbers<[1], [0], [0], [1], [0, 0, 1, 1], [], []>} : vector<8x32xbf16>, vector<32x128xbf16>, vector<8x128xf32> -> vector<8x128xf32>
    %90 = arith.addf %87, %89 : vector<8x128xf32>
    %91 = math.tanh %90 : vector<8x128xf32>
    %cst_38 = arith.constant 5.000000e-01 : f32
    %92 = vector.broadcast %cst_38 : f32 to vector<8x128xf32>
    %93 = arith.mulf %92, %91 : vector<8x128xf32>
    %cst_39 = arith.constant 5.000000e-01 : f32
    %94 = vector.broadcast %cst_39 : f32 to vector<8x128xf32>
    %95 = arith.addf %93, %94 : vector<8x128xf32>
    %96 = vector.extract_strided_slice %95 {offsets = [0, 0], sizes = [8, 32], strides = [1, 1]} : vector<8x128xf32> to vector<8x32xf32>
    %97 = vector.extract_strided_slice %95 {offsets = [0, 32], sizes = [8, 32], strides = [1, 1]} : vector<8x128xf32> to vector<8x32xf32>
    %98 = vector.extract_strided_slice %91 {offsets = [0, 64], sizes = [8, 32], strides = [1, 1]} : vector<8x128xf32> to vector<8x32xf32>
    %99 = vector.extract_strided_slice %95 {offsets = [0, 96], sizes = [8, 32], strides = [1, 1]} : vector<8x128xf32> to vector<8x32xf32>
    %100 = arith.mulf %97, %83 : vector<8x32xf32>
    %101 = arith.mulf %96, %98 : vector<8x32xf32>
    %102 = arith.addf %100, %101 : vector<8x32xf32>
    %103 = math.tanh %102 : vector<8x32xf32>
    %104 = arith.mulf %99, %103 : vector<8x32xf32>
    %c32_40 = arith.constant 32 : index
    %c0_41 = arith.constant 0 : index
    %105 = vector.load %arg11[%c32_40, %c0_41] : memref<64x32xf32, #tpu.memory_space<vmem>>, vector<8x32xf32>
    tpu.vector_store %arg11[%c32_40, %c0_41], %104 {strides = array<i32>} : memref<64x32xf32, #tpu.memory_space<vmem>>, vector<8x32xf32>,
    %c40 = arith.constant 40 : index
    %c0_42 = arith.constant 0 : index
    %106 = vector.load %arg10[%c40, %c0_42] : memref<64x128xf32, #tpu.memory_space<vmem>>, vector<8x128xf32>
    %107 = arith.truncf %104 : vector<8x32xf32> to vector<8x32xbf16>
    %cst_43 = arith.constant dense<0.000000e+00> : vector<8x128xf32>
    %108 = tpu.matmul %107, %1, %cst_43 {dimension_numbers = #tpu.dot_dimension_numbers<[1], [0], [0], [1], [0, 0, 1, 1], [], []>} : vector<8x32xbf16>, vector<32x128xbf16>, vector<8x128xf32> -> vector<8x128xf32>
    %109 = arith.addf %106, %108 : vector<8x128xf32>
    %110 = math.tanh %109 : vector<8x128xf32>
    %cst_44 = arith.constant 5.000000e-01 : f32
    %111 = vector.broadcast %cst_44 : f32 to vector<8x128xf32>
    %112 = arith.mulf %111, %110 : vector<8x128xf32>
    %cst_45 = arith.constant 5.000000e-01 : f32
    %113 = vector.broadcast %cst_45 : f32 to vector<8x128xf32>
    %114 = arith.addf %112, %113 : vector<8x128xf32>
    %115 = vector.extract_strided_slice %114 {offsets = [0, 0], sizes = [8, 32], strides = [1, 1]} : vector<8x128xf32> to vector<8x32xf32>
    %116 = vector.extract_strided_slice %114 {offsets = [0, 32], sizes = [8, 32], strides = [1, 1]} : vector<8x128xf32> to vector<8x32xf32>
    %117 = vector.extract_strided_slice %110 {offsets = [0, 64], sizes = [8, 32], strides = [1, 1]} : vector<8x128xf32> to vector<8x32xf32>
    %118 = vector.extract_strided_slice %114 {offsets = [0, 96], sizes = [8, 32], strides = [1, 1]} : vector<8x128xf32> to vector<8x32xf32>
    %119 = arith.mulf %116, %102 : vector<8x32xf32>
    %120 = arith.mulf %115, %117 : vector<8x32xf32>
    %121 = arith.addf %119, %120 : vector<8x32xf32>
    %122 = math.tanh %121 : vector<8x32xf32>
    %123 = arith.mulf %118, %122 : vector<8x32xf32>
    %c40_46 = arith.constant 40 : index
    %c0_47 = arith.constant 0 : index
    %124 = vector.load %arg11[%c40_46, %c0_47] : memref<64x32xf32, #tpu.memory_space<vmem>>, vector<8x32xf32>
    tpu.vector_store %arg11[%c40_46, %c0_47], %123 {strides = array<i32>} : memref<64x32xf32, #tpu.memory_space<vmem>>, vector<8x32xf32>,
    %c48 = arith.constant 48 : index
    %c0_48 = arith.constant 0 : index
    %125 = vector.load %arg10[%c48, %c0_48] : memref<64x128xf32, #tpu.memory_space<vmem>>, vector<8x128xf32>
    %126 = arith.truncf %123 : vector<8x32xf32> to vector<8x32xbf16>
    %cst_49 = arith.constant dense<0.000000e+00> : vector<8x128xf32>
    %127 = tpu.matmul %126, %1, %cst_49 {dimension_numbers = #tpu.dot_dimension_numbers<[1], [0], [0], [1], [0, 0, 1, 1], [], []>} : vector<8x32xbf16>, vector<32x128xbf16>, vector<8x128xf32> -> vector<8x128xf32>
    %128 = arith.addf %125, %127 : vector<8x128xf32>
    %129 = math.tanh %128 : vector<8x128xf32>
    %cst_50 = arith.constant 5.000000e-01 : f32
    %130 = vector.broadcast %cst_50 : f32 to vector<8x128xf32>
    %131 = arith.mulf %130, %129 : vector<8x128xf32>
    %cst_51 = arith.constant 5.000000e-01 : f32
    %132 = vector.broadcast %cst_51 : f32 to vector<8x128xf32>
    %133 = arith.addf %131, %132 : vector<8x128xf32>
    %134 = vector.extract_strided_slice %133 {offsets = [0, 0], sizes = [8, 32], strides = [1, 1]} : vector<8x128xf32> to vector<8x32xf32>
    %135 = vector.extract_strided_slice %133 {offsets = [0, 32], sizes = [8, 32], strides = [1, 1]} : vector<8x128xf32> to vector<8x32xf32>
    %136 = vector.extract_strided_slice %129 {offsets = [0, 64], sizes = [8, 32], strides = [1, 1]} : vector<8x128xf32> to vector<8x32xf32>
    %137 = vector.extract_strided_slice %133 {offsets = [0, 96], sizes = [8, 32], strides = [1, 1]} : vector<8x128xf32> to vector<8x32xf32>
    %138 = arith.mulf %135, %121 : vector<8x32xf32>
    %139 = arith.mulf %134, %136 : vector<8x32xf32>
    %140 = arith.addf %138, %139 : vector<8x32xf32>
    %141 = math.tanh %140 : vector<8x32xf32>
    %142 = arith.mulf %137, %141 : vector<8x32xf32>
    %c48_52 = arith.constant 48 : index
    %c0_53 = arith.constant 0 : index
    %143 = vector.load %arg11[%c48_52, %c0_53] : memref<64x32xf32, #tpu.memory_space<vmem>>, vector<8x32xf32>
    tpu.vector_store %arg11[%c48_52, %c0_53], %142 {strides = array<i32>} : memref<64x32xf32, #tpu.memory_space<vmem>>, vector<8x32xf32>,
    %c56 = arith.constant 56 : index
    %c0_54 = arith.constant 0 : index
    %144 = vector.load %arg10[%c56, %c0_54] : memref<64x128xf32, #tpu.memory_space<vmem>>, vector<8x128xf32>
    %145 = arith.truncf %142 : vector<8x32xf32> to vector<8x32xbf16>
    %cst_55 = arith.constant dense<0.000000e+00> : vector<8x128xf32>
    %146 = tpu.matmul %145, %1, %cst_55 {dimension_numbers = #tpu.dot_dimension_numbers<[1], [0], [0], [1], [0, 0, 1, 1], [], []>} : vector<8x32xbf16>, vector<32x128xbf16>, vector<8x128xf32> -> vector<8x128xf32>
    %147 = arith.addf %144, %146 : vector<8x128xf32>
    %148 = math.tanh %147 : vector<8x128xf32>
    %cst_56 = arith.constant 5.000000e-01 : f32
    %149 = vector.broadcast %cst_56 : f32 to vector<8x128xf32>
    %150 = arith.mulf %149, %148 : vector<8x128xf32>
    %cst_57 = arith.constant 5.000000e-01 : f32
    %151 = vector.broadcast %cst_57 : f32 to vector<8x128xf32>
    %152 = arith.addf %150, %151 : vector<8x128xf32>
    %153 = vector.extract_strided_slice %152 {offsets = [0, 0], sizes = [8, 32], strides = [1, 1]} : vector<8x128xf32> to vector<8x32xf32>
    %154 = vector.extract_strided_slice %152 {offsets = [0, 32], sizes = [8, 32], strides = [1, 1]} : vector<8x128xf32> to vector<8x32xf32>
    %155 = vector.extract_strided_slice %148 {offsets = [0, 64], sizes = [8, 32], strides = [1, 1]} : vector<8x128xf32> to vector<8x32xf32>
    %156 = vector.extract_strided_slice %152 {offsets = [0, 96], sizes = [8, 32], strides = [1, 1]} : vector<8x128xf32> to vector<8x32xf32>
    %157 = arith.mulf %154, %140 : vector<8x32xf32>
    %158 = arith.mulf %153, %155 : vector<8x32xf32>
    %159 = arith.addf %157, %158 : vector<8x32xf32>
    %160 = math.tanh %159 : vector<8x32xf32>
    %161 = arith.mulf %156, %160 : vector<8x32xf32>
    %c56_58 = arith.constant 56 : index
    %c0_59 = arith.constant 0 : index
    %162 = vector.load %arg11[%c56_58, %c0_59] : memref<64x32xf32, #tpu.memory_space<vmem>>, vector<8x32xf32>
    tpu.vector_store %arg11[%c56_58, %c0_59], %161 {strides = array<i32>} : memref<64x32xf32, #tpu.memory_space<vmem>>, vector<8x32xf32>,
    %c0_60 = arith.constant 0 : index
    %c0_61 = arith.constant 0 : index
    %163 = vector.load %arg4[%c0_60, %c0_61] : memref<32x128xbf16, #tpu.memory_space<vmem>>, vector<32x128xbf16>
    %c0_62 = arith.constant 0 : index
    %c0_63 = arith.constant 0 : index
    %164 = vector.load %arg5[%c0_62, %c0_63] : memref<32x128xbf16, #tpu.memory_space<vmem>>, vector<32x128xbf16>
    %c0_64 = arith.constant 0 : index
    %c0_65 = arith.constant 0 : index
    %165 = vector.load %arg6[%c0_64, %c0_65] : memref<1x128xf32, #tpu.memory_space<vmem>>, vector<1x128xf32>
    %c0_66 = arith.constant 0 : index
    %c0_67 = arith.constant 0 : index
    %166 = vector.load %arg11[%c0_66, %c0_67] : memref<64x32xf32, #tpu.memory_space<vmem>>, vector<64x32xf32>
    %167 = arith.truncf %166 : vector<64x32xf32> to vector<64x32xbf16>
    %cst_68 = arith.constant dense<0.000000e+00> : vector<64x128xf32>
    %168 = tpu.matmul %167, %163, %cst_68 {dimension_numbers = #tpu.dot_dimension_numbers<[1], [0], [0], [1], [0, 0, 1, 1], [], []>} : vector<64x32xbf16>, vector<32x128xbf16>, vector<64x128xf32> -> vector<64x128xf32>
    %169 = vector.broadcast %165 : vector<1x128xf32> to vector<64x128xf32>
    %170 = arith.addf %168, %169 : vector<64x128xf32>
    %c0_69 = arith.constant 0 : index
    %c0_70 = arith.constant 0 : index
    %171 = vector.load %arg10[%c0_69, %c0_70] : memref<64x128xf32, #tpu.memory_space<vmem>>, vector<64x128xf32>
    tpu.vector_store %arg10[%c0_69, %c0_70], %170 {strides = array<i32>} : memref<64x128xf32, #tpu.memory_space<vmem>>, vector<64x128xf32>,
    %cst_71 = arith.constant 0.000000e+00 : f32
    %172 = vector.broadcast %cst_71 : f32 to vector<8x32xf32>
    %cst_72 = arith.constant 0.000000e+00 : f32
    %173 = vector.broadcast %cst_72 : f32 to vector<8x32xf32>
    %c0_73 = arith.constant 0 : index
    %c0_74 = arith.constant 0 : index
    %174 = vector.load %arg10[%c0_73, %c0_74] : memref<64x128xf32, #tpu.memory_space<vmem>>, vector<8x128xf32>
    %175 = arith.truncf %172 : vector<8x32xf32> to vector<8x32xbf16>
    %cst_75 = arith.constant dense<0.000000e+00> : vector<8x128xf32>
    %176 = tpu.matmul %175, %164, %cst_75 {dimension_numbers = #tpu.dot_dimension_numbers<[1], [0], [0], [1], [0, 0, 1, 1], [], []>} : vector<8x32xbf16>, vector<32x128xbf16>, vector<8x128xf32> -> vector<8x128xf32>
    %177 = arith.addf %174, %176 : vector<8x128xf32>
    %178 = math.tanh %177 : vector<8x128xf32>
    %cst_76 = arith.constant 5.000000e-01 : f32
    %179 = vector.broadcast %cst_76 : f32 to vector<8x128xf32>
    %180 = arith.mulf %179, %178 : vector<8x128xf32>
    %cst_77 = arith.constant 5.000000e-01 : f32
    %181 = vector.broadcast %cst_77 : f32 to vector<8x128xf32>
    %182 = arith.addf %180, %181 : vector<8x128xf32>
    %183 = vector.extract_strided_slice %182 {offsets = [0, 0], sizes = [8, 32], strides = [1, 1]} : vector<8x128xf32> to vector<8x32xf32>
    %184 = vector.extract_strided_slice %182 {offsets = [0, 32], sizes = [8, 32], strides = [1, 1]} : vector<8x128xf32> to vector<8x32xf32>
    %185 = vector.extract_strided_slice %178 {offsets = [0, 64], sizes = [8, 32], strides = [1, 1]} : vector<8x128xf32> to vector<8x32xf32>
    %186 = vector.extract_strided_slice %182 {offsets = [0, 96], sizes = [8, 32], strides = [1, 1]} : vector<8x128xf32> to vector<8x32xf32>
    %187 = arith.mulf %184, %173 : vector<8x32xf32>
    %188 = arith.mulf %183, %185 : vector<8x32xf32>
    %189 = arith.addf %187, %188 : vector<8x32xf32>
    %190 = math.tanh %189 : vector<8x32xf32>
    %191 = arith.mulf %186, %190 : vector<8x32xf32>
    %c0_78 = arith.constant 0 : index
    %c0_79 = arith.constant 0 : index
    %192 = vector.load %arg11[%c0_78, %c0_79] : memref<64x32xf32, #tpu.memory_space<vmem>>, vector<8x32xf32>
    tpu.vector_store %arg11[%c0_78, %c0_79], %191 {strides = array<i32>} : memref<64x32xf32, #tpu.memory_space<vmem>>, vector<8x32xf32>,
    %c8_80 = arith.constant 8 : index
    %c0_81 = arith.constant 0 : index
    %193 = vector.load %arg10[%c8_80, %c0_81] : memref<64x128xf32, #tpu.memory_space<vmem>>, vector<8x128xf32>
    %194 = arith.truncf %191 : vector<8x32xf32> to vector<8x32xbf16>
    %cst_82 = arith.constant dense<0.000000e+00> : vector<8x128xf32>
    %195 = tpu.matmul %194, %164, %cst_82 {dimension_numbers = #tpu.dot_dimension_numbers<[1], [0], [0], [1], [0, 0, 1, 1], [], []>} : vector<8x32xbf16>, vector<32x128xbf16>, vector<8x128xf32> -> vector<8x128xf32>
    %196 = arith.addf %193, %195 : vector<8x128xf32>
    %197 = math.tanh %196 : vector<8x128xf32>
    %cst_83 = arith.constant 5.000000e-01 : f32
    %198 = vector.broadcast %cst_83 : f32 to vector<8x128xf32>
    %199 = arith.mulf %198, %197 : vector<8x128xf32>
    %cst_84 = arith.constant 5.000000e-01 : f32
    %200 = vector.broadcast %cst_84 : f32 to vector<8x128xf32>
    %201 = arith.addf %199, %200 : vector<8x128xf32>
    %202 = vector.extract_strided_slice %201 {offsets = [0, 0], sizes = [8, 32], strides = [1, 1]} : vector<8x128xf32> to vector<8x32xf32>
    %203 = vector.extract_strided_slice %201 {offsets = [0, 32], sizes = [8, 32], strides = [1, 1]} : vector<8x128xf32> to vector<8x32xf32>
    %204 = vector.extract_strided_slice %197 {offsets = [0, 64], sizes = [8, 32], strides = [1, 1]} : vector<8x128xf32> to vector<8x32xf32>
    %205 = vector.extract_strided_slice %201 {offsets = [0, 96], sizes = [8, 32], strides = [1, 1]} : vector<8x128xf32> to vector<8x32xf32>
    %206 = arith.mulf %203, %189 : vector<8x32xf32>
    %207 = arith.mulf %202, %204 : vector<8x32xf32>
    %208 = arith.addf %206, %207 : vector<8x32xf32>
    %209 = math.tanh %208 : vector<8x32xf32>
    %210 = arith.mulf %205, %209 : vector<8x32xf32>
    %c8_85 = arith.constant 8 : index
    %c0_86 = arith.constant 0 : index
    %211 = vector.load %arg11[%c8_85, %c0_86] : memref<64x32xf32, #tpu.memory_space<vmem>>, vector<8x32xf32>
    tpu.vector_store %arg11[%c8_85, %c0_86], %210 {strides = array<i32>} : memref<64x32xf32, #tpu.memory_space<vmem>>, vector<8x32xf32>,
    %c16_87 = arith.constant 16 : index
    %c0_88 = arith.constant 0 : index
    %212 = vector.load %arg10[%c16_87, %c0_88] : memref<64x128xf32, #tpu.memory_space<vmem>>, vector<8x128xf32>
    %213 = arith.truncf %210 : vector<8x32xf32> to vector<8x32xbf16>
    %cst_89 = arith.constant dense<0.000000e+00> : vector<8x128xf32>
    %214 = tpu.matmul %213, %164, %cst_89 {dimension_numbers = #tpu.dot_dimension_numbers<[1], [0], [0], [1], [0, 0, 1, 1], [], []>} : vector<8x32xbf16>, vector<32x128xbf16>, vector<8x128xf32> -> vector<8x128xf32>
    %215 = arith.addf %212, %214 : vector<8x128xf32>
    %216 = math.tanh %215 : vector<8x128xf32>
    %cst_90 = arith.constant 5.000000e-01 : f32
    %217 = vector.broadcast %cst_90 : f32 to vector<8x128xf32>
    %218 = arith.mulf %217, %216 : vector<8x128xf32>
    %cst_91 = arith.constant 5.000000e-01 : f32
    %219 = vector.broadcast %cst_91 : f32 to vector<8x128xf32>
    %220 = arith.addf %218, %219 : vector<8x128xf32>
    %221 = vector.extract_strided_slice %220 {offsets = [0, 0], sizes = [8, 32], strides = [1, 1]} : vector<8x128xf32> to vector<8x32xf32>
    %222 = vector.extract_strided_slice %220 {offsets = [0, 32], sizes = [8, 32], strides = [1, 1]} : vector<8x128xf32> to vector<8x32xf32>
    %223 = vector.extract_strided_slice %216 {offsets = [0, 64], sizes = [8, 32], strides = [1, 1]} : vector<8x128xf32> to vector<8x32xf32>
    %224 = vector.extract_strided_slice %220 {offsets = [0, 96], sizes = [8, 32], strides = [1, 1]} : vector<8x128xf32> to vector<8x32xf32>
    %225 = arith.mulf %222, %208 : vector<8x32xf32>
    %226 = arith.mulf %221, %223 : vector<8x32xf32>
    %227 = arith.addf %225, %226 : vector<8x32xf32>
    %228 = math.tanh %227 : vector<8x32xf32>
    %229 = arith.mulf %224, %228 : vector<8x32xf32>
    %c16_92 = arith.constant 16 : index
    %c0_93 = arith.constant 0 : index
    %230 = vector.load %arg11[%c16_92, %c0_93] : memref<64x32xf32, #tpu.memory_space<vmem>>, vector<8x32xf32>
    tpu.vector_store %arg11[%c16_92, %c0_93], %229 {strides = array<i32>} : memref<64x32xf32, #tpu.memory_space<vmem>>, vector<8x32xf32>,
    %c24_94 = arith.constant 24 : index
    %c0_95 = arith.constant 0 : index
    %231 = vector.load %arg10[%c24_94, %c0_95] : memref<64x128xf32, #tpu.memory_space<vmem>>, vector<8x128xf32>
    %232 = arith.truncf %229 : vector<8x32xf32> to vector<8x32xbf16>
    %cst_96 = arith.constant dense<0.000000e+00> : vector<8x128xf32>
    %233 = tpu.matmul %232, %164, %cst_96 {dimension_numbers = #tpu.dot_dimension_numbers<[1], [0], [0], [1], [0, 0, 1, 1], [], []>} : vector<8x32xbf16>, vector<32x128xbf16>, vector<8x128xf32> -> vector<8x128xf32>
    %234 = arith.addf %231, %233 : vector<8x128xf32>
    %235 = math.tanh %234 : vector<8x128xf32>
    %cst_97 = arith.constant 5.000000e-01 : f32
    %236 = vector.broadcast %cst_97 : f32 to vector<8x128xf32>
    %237 = arith.mulf %236, %235 : vector<8x128xf32>
    %cst_98 = arith.constant 5.000000e-01 : f32
    %238 = vector.broadcast %cst_98 : f32 to vector<8x128xf32>
    %239 = arith.addf %237, %238 : vector<8x128xf32>
    %240 = vector.extract_strided_slice %239 {offsets = [0, 0], sizes = [8, 32], strides = [1, 1]} : vector<8x128xf32> to vector<8x32xf32>
    %241 = vector.extract_strided_slice %239 {offsets = [0, 32], sizes = [8, 32], strides = [1, 1]} : vector<8x128xf32> to vector<8x32xf32>
    %242 = vector.extract_strided_slice %235 {offsets = [0, 64], sizes = [8, 32], strides = [1, 1]} : vector<8x128xf32> to vector<8x32xf32>
    %243 = vector.extract_strided_slice %239 {offsets = [0, 96], sizes = [8, 32], strides = [1, 1]} : vector<8x128xf32> to vector<8x32xf32>
    %244 = arith.mulf %241, %227 : vector<8x32xf32>
    %245 = arith.mulf %240, %242 : vector<8x32xf32>
    %246 = arith.addf %244, %245 : vector<8x32xf32>
    %247 = math.tanh %246 : vector<8x32xf32>
    %248 = arith.mulf %243, %247 : vector<8x32xf32>
    %c24_99 = arith.constant 24 : index
    %c0_100 = arith.constant 0 : index
    %249 = vector.load %arg11[%c24_99, %c0_100] : memref<64x32xf32, #tpu.memory_space<vmem>>, vector<8x32xf32>
    tpu.vector_store %arg11[%c24_99, %c0_100], %248 {strides = array<i32>} : memref<64x32xf32, #tpu.memory_space<vmem>>, vector<8x32xf32>,
    %c32_101 = arith.constant 32 : index
    %c0_102 = arith.constant 0 : index
    %250 = vector.load %arg10[%c32_101, %c0_102] : memref<64x128xf32, #tpu.memory_space<vmem>>, vector<8x128xf32>
    %251 = arith.truncf %248 : vector<8x32xf32> to vector<8x32xbf16>
    %cst_103 = arith.constant dense<0.000000e+00> : vector<8x128xf32>
    %252 = tpu.matmul %251, %164, %cst_103 {dimension_numbers = #tpu.dot_dimension_numbers<[1], [0], [0], [1], [0, 0, 1, 1], [], []>} : vector<8x32xbf16>, vector<32x128xbf16>, vector<8x128xf32> -> vector<8x128xf32>
    %253 = arith.addf %250, %252 : vector<8x128xf32>
    %254 = math.tanh %253 : vector<8x128xf32>
    %cst_104 = arith.constant 5.000000e-01 : f32
    %255 = vector.broadcast %cst_104 : f32 to vector<8x128xf32>
    %256 = arith.mulf %255, %254 : vector<8x128xf32>
    %cst_105 = arith.constant 5.000000e-01 : f32
    %257 = vector.broadcast %cst_105 : f32 to vector<8x128xf32>
    %258 = arith.addf %256, %257 : vector<8x128xf32>
    %259 = vector.extract_strided_slice %258 {offsets = [0, 0], sizes = [8, 32], strides = [1, 1]} : vector<8x128xf32> to vector<8x32xf32>
    %260 = vector.extract_strided_slice %258 {offsets = [0, 32], sizes = [8, 32], strides = [1, 1]} : vector<8x128xf32> to vector<8x32xf32>
    %261 = vector.extract_strided_slice %254 {offsets = [0, 64], sizes = [8, 32], strides = [1, 1]} : vector<8x128xf32> to vector<8x32xf32>
    %262 = vector.extract_strided_slice %258 {offsets = [0, 96], sizes = [8, 32], strides = [1, 1]} : vector<8x128xf32> to vector<8x32xf32>
    %263 = arith.mulf %260, %246 : vector<8x32xf32>
    %264 = arith.mulf %259, %261 : vector<8x32xf32>
    %265 = arith.addf %263, %264 : vector<8x32xf32>
    %266 = math.tanh %265 : vector<8x32xf32>
    %267 = arith.mulf %262, %266 : vector<8x32xf32>
    %c32_106 = arith.constant 32 : index
    %c0_107 = arith.constant 0 : index
    %268 = vector.load %arg11[%c32_106, %c0_107] : memref<64x32xf32, #tpu.memory_space<vmem>>, vector<8x32xf32>
    tpu.vector_store %arg11[%c32_106, %c0_107], %267 {strides = array<i32>} : memref<64x32xf32, #tpu.memory_space<vmem>>, vector<8x32xf32>,
    %c40_108 = arith.constant 40 : index
    %c0_109 = arith.constant 0 : index
    %269 = vector.load %arg10[%c40_108, %c0_109] : memref<64x128xf32, #tpu.memory_space<vmem>>, vector<8x128xf32>
    %270 = arith.truncf %267 : vector<8x32xf32> to vector<8x32xbf16>
    %cst_110 = arith.constant dense<0.000000e+00> : vector<8x128xf32>
    %271 = tpu.matmul %270, %164, %cst_110 {dimension_numbers = #tpu.dot_dimension_numbers<[1], [0], [0], [1], [0, 0, 1, 1], [], []>} : vector<8x32xbf16>, vector<32x128xbf16>, vector<8x128xf32> -> vector<8x128xf32>
    %272 = arith.addf %269, %271 : vector<8x128xf32>
    %273 = math.tanh %272 : vector<8x128xf32>
    %cst_111 = arith.constant 5.000000e-01 : f32
    %274 = vector.broadcast %cst_111 : f32 to vector<8x128xf32>
    %275 = arith.mulf %274, %273 : vector<8x128xf32>
    %cst_112 = arith.constant 5.000000e-01 : f32
    %276 = vector.broadcast %cst_112 : f32 to vector<8x128xf32>
    %277 = arith.addf %275, %276 : vector<8x128xf32>
    %278 = vector.extract_strided_slice %277 {offsets = [0, 0], sizes = [8, 32], strides = [1, 1]} : vector<8x128xf32> to vector<8x32xf32>
    %279 = vector.extract_strided_slice %277 {offsets = [0, 32], sizes = [8, 32], strides = [1, 1]} : vector<8x128xf32> to vector<8x32xf32>
    %280 = vector.extract_strided_slice %273 {offsets = [0, 64], sizes = [8, 32], strides = [1, 1]} : vector<8x128xf32> to vector<8x32xf32>
    %281 = vector.extract_strided_slice %277 {offsets = [0, 96], sizes = [8, 32], strides = [1, 1]} : vector<8x128xf32> to vector<8x32xf32>
    %282 = arith.mulf %279, %265 : vector<8x32xf32>
    %283 = arith.mulf %278, %280 : vector<8x32xf32>
    %284 = arith.addf %282, %283 : vector<8x32xf32>
    %285 = math.tanh %284 : vector<8x32xf32>
    %286 = arith.mulf %281, %285 : vector<8x32xf32>
    %c40_113 = arith.constant 40 : index
    %c0_114 = arith.constant 0 : index
    %287 = vector.load %arg11[%c40_113, %c0_114] : memref<64x32xf32, #tpu.memory_space<vmem>>, vector<8x32xf32>
    tpu.vector_store %arg11[%c40_113, %c0_114], %286 {strides = array<i32>} : memref<64x32xf32, #tpu.memory_space<vmem>>, vector<8x32xf32>,
    %c48_115 = arith.constant 48 : index
    %c0_116 = arith.constant 0 : index
    %288 = vector.load %arg10[%c48_115, %c0_116] : memref<64x128xf32, #tpu.memory_space<vmem>>, vector<8x128xf32>
    %289 = arith.truncf %286 : vector<8x32xf32> to vector<8x32xbf16>
    %cst_117 = arith.constant dense<0.000000e+00> : vector<8x128xf32>
    %290 = tpu.matmul %289, %164, %cst_117 {dimension_numbers = #tpu.dot_dimension_numbers<[1], [0], [0], [1], [0, 0, 1, 1], [], []>} : vector<8x32xbf16>, vector<32x128xbf16>, vector<8x128xf32> -> vector<8x128xf32>
    %291 = arith.addf %288, %290 : vector<8x128xf32>
    %292 = math.tanh %291 : vector<8x128xf32>
    %cst_118 = arith.constant 5.000000e-01 : f32
    %293 = vector.broadcast %cst_118 : f32 to vector<8x128xf32>
    %294 = arith.mulf %293, %292 : vector<8x128xf32>
    %cst_119 = arith.constant 5.000000e-01 : f32
    %295 = vector.broadcast %cst_119 : f32 to vector<8x128xf32>
    %296 = arith.addf %294, %295 : vector<8x128xf32>
    %297 = vector.extract_strided_slice %296 {offsets = [0, 0], sizes = [8, 32], strides = [1, 1]} : vector<8x128xf32> to vector<8x32xf32>
    %298 = vector.extract_strided_slice %296 {offsets = [0, 32], sizes = [8, 32], strides = [1, 1]} : vector<8x128xf32> to vector<8x32xf32>
    %299 = vector.extract_strided_slice %292 {offsets = [0, 64], sizes = [8, 32], strides = [1, 1]} : vector<8x128xf32> to vector<8x32xf32>
    %300 = vector.extract_strided_slice %296 {offsets = [0, 96], sizes = [8, 32], strides = [1, 1]} : vector<8x128xf32> to vector<8x32xf32>
    %301 = arith.mulf %298, %284 : vector<8x32xf32>
    %302 = arith.mulf %297, %299 : vector<8x32xf32>
    %303 = arith.addf %301, %302 : vector<8x32xf32>
    %304 = math.tanh %303 : vector<8x32xf32>
    %305 = arith.mulf %300, %304 : vector<8x32xf32>
    %c48_120 = arith.constant 48 : index
    %c0_121 = arith.constant 0 : index
    %306 = vector.load %arg11[%c48_120, %c0_121] : memref<64x32xf32, #tpu.memory_space<vmem>>, vector<8x32xf32>
    tpu.vector_store %arg11[%c48_120, %c0_121], %305 {strides = array<i32>} : memref<64x32xf32, #tpu.memory_space<vmem>>, vector<8x32xf32>,
    %c56_122 = arith.constant 56 : index
    %c0_123 = arith.constant 0 : index
    %307 = vector.load %arg10[%c56_122, %c0_123] : memref<64x128xf32, #tpu.memory_space<vmem>>, vector<8x128xf32>
    %308 = arith.truncf %305 : vector<8x32xf32> to vector<8x32xbf16>
    %cst_124 = arith.constant dense<0.000000e+00> : vector<8x128xf32>
    %309 = tpu.matmul %308, %164, %cst_124 {dimension_numbers = #tpu.dot_dimension_numbers<[1], [0], [0], [1], [0, 0, 1, 1], [], []>} : vector<8x32xbf16>, vector<32x128xbf16>, vector<8x128xf32> -> vector<8x128xf32>
    %310 = arith.addf %307, %309 : vector<8x128xf32>
    %311 = math.tanh %310 : vector<8x128xf32>
    %cst_125 = arith.constant 5.000000e-01 : f32
    %312 = vector.broadcast %cst_125 : f32 to vector<8x128xf32>
    %313 = arith.mulf %312, %311 : vector<8x128xf32>
    %cst_126 = arith.constant 5.000000e-01 : f32
    %314 = vector.broadcast %cst_126 : f32 to vector<8x128xf32>
    %315 = arith.addf %313, %314 : vector<8x128xf32>
    %316 = vector.extract_strided_slice %315 {offsets = [0, 0], sizes = [8, 32], strides = [1, 1]} : vector<8x128xf32> to vector<8x32xf32>
    %317 = vector.extract_strided_slice %315 {offsets = [0, 32], sizes = [8, 32], strides = [1, 1]} : vector<8x128xf32> to vector<8x32xf32>
    %318 = vector.extract_strided_slice %311 {offsets = [0, 64], sizes = [8, 32], strides = [1, 1]} : vector<8x128xf32> to vector<8x32xf32>
    %319 = vector.extract_strided_slice %315 {offsets = [0, 96], sizes = [8, 32], strides = [1, 1]} : vector<8x128xf32> to vector<8x32xf32>
    %320 = arith.mulf %317, %303 : vector<8x32xf32>
    %321 = arith.mulf %316, %318 : vector<8x32xf32>
    %322 = arith.addf %320, %321 : vector<8x32xf32>
    %323 = math.tanh %322 : vector<8x32xf32>
    %324 = arith.mulf %319, %323 : vector<8x32xf32>
    %c56_127 = arith.constant 56 : index
    %c0_128 = arith.constant 0 : index
    %325 = vector.load %arg11[%c56_127, %c0_128] : memref<64x32xf32, #tpu.memory_space<vmem>>, vector<8x32xf32>
    tpu.vector_store %arg11[%c56_127, %c0_128], %324 {strides = array<i32>} : memref<64x32xf32, #tpu.memory_space<vmem>>, vector<8x32xf32>,
    %c0_129 = arith.constant 0 : index
    %c0_130 = arith.constant 0 : index
    %326 = vector.load %arg11[%c0_129, %c0_130] : memref<64x32xf32, #tpu.memory_space<vmem>>, vector<64x32xf32>
    %c0_131 = arith.constant 0 : index
    %c0_132 = arith.constant 0 : index
    %327 = vector.load %arg7[%c0_131, %c0_132] : memref<32x1xf32, #tpu.memory_space<vmem>>, vector<32x1xf32>
    %cst_133 = arith.constant dense<0.000000e+00> : vector<64x1xf32>
    %328 = tpu.matmul %326, %327, %cst_133 {dimension_numbers = #tpu.dot_dimension_numbers<[1], [0], [0], [1], [0, 0, 1, 1], [], []>} : vector<64x32xf32>, vector<32x1xf32>, vector<64x1xf32> -> vector<64x1xf32>
    %c0_134 = arith.constant 0 : index
    %c0_135 = arith.constant 0 : index
    %329 = vector.load %arg8[%c0_134, %c0_135] : memref<1x1xf32, #tpu.memory_space<vmem>>, vector<1x1xf32>
    %330 = vector.broadcast %329 : vector<1x1xf32> to vector<64x1xf32>
    %331 = arith.addf %328, %330 : vector<64x1xf32>
    %cst_136 = arith.constant 0.000000e+00 : f32
    %332 = vector.broadcast %cst_136 : f32 to vector<64x1xf32>
    %333 = arith.maximumf %331, %332 : vector<64x1xf32>
    %c0_137 = arith.constant 0 : index
    %c0_138 = arith.constant 0 : index
    %334 = vector.load %arg9[%c0_137, %c0_138] : memref<64x1xf32, #tpu.memory_space<vmem>>, vector<64x1xf32>
    tpu.vector_store %arg9[%c0_137, %c0_138], %333 {strides = array<i32>} : memref<64x1xf32, #tpu.memory_space<vmem>>, vector<64x1xf32>,
    return
  }
}

</mosaic_0001>

<llo_original>
// kernel: lstm_predictor_forward.1
$region0: #{lstm_predictor_forward.1}
  #allocation0 [shape = 'u32[]', space=smem, size = 0x4, offset = 0x4, fixed_abs, tag = 'smem constant byte address 0x4 - core index']
  #allocation1 [shape = 'u32[144,128]{1,0:T(1,128)}', space=vmem, size = 0x12000, scoped, tag = 'internal scratch']
  #allocation2 [shape = 'f32[64,128]{1,0:T(8,128)}', space=vmem, size = 0x8000, scoped, tag = 'scratch operand']
  #allocation3 [shape = 'f32[64,32]{1,0:T(8,128)}', space=vmem, size = 0x8000, scoped, tag = 'scratch operand']
  #allocation4 [shape = 'f32[1,1]{1,0:T(1,128)S(1)}', space=vmem, size = 0x200, scoped, tag = 'scoped memory for lstm_predictor_forward.1']
  %s0 = inlined_call_operand.vmem [shape: f32[64,8], index: 0, kind: input, shape index: {}]
  %s1 = inlined_call_operand.vmem [shape: bf16[8,128], index: 1, kind: input, shape index: {}]
  %s2 = inlined_call_operand.vmem [shape: bf16[32,128], index: 2, kind: input, shape index: {}]
  %s3 = inlined_call_operand.vmem [shape: f32[1,128], index: 3, kind: input, shape index: {}]
  %s4 = inlined_call_operand.vmem [shape: bf16[32,128], index: 4, kind: input, shape index: {}]
  %s5 = inlined_call_operand.vmem [shape: bf16[32,128], index: 5, kind: input, shape index: {}]
  %s6 = inlined_call_operand.vmem [shape: f32[1,128], index: 6, kind: input, shape index: {}]
  %s7 = inlined_call_operand.vmem [shape: f32[32,1], index: 7, kind: input, shape index: {}]
  %s8 = inlined_call_operand.<no memory space> [shape: f32[1,1], index: 8, kind: input, shape index: {}]
  %s9 = inlined_call_operand.vmem [shape: f32[64,1], index: 9, kind: output, shape index: {}]
  %s10 = sld [smem:[#allocation0]]
  $region46: #{lstm_predictor_forward.1} parent=0
    _
  %s12 = ssub.s32 1, %s10
  %s13 = scalar_select 0, %s12, %s10
  %v14 = vstv %s8
  %15 = vst [vmem:[#allocation4] sm:$0x1] %v14
  // Predicated region
  $region2: #{lstm_predictor_forward.1} parent=0 // pred_check
    _
  $region3: #{lstm_predictor_forward.1} parent=0 // pred_check_branch
    %17 = sbr.rel (0) target = $region5
  $region4: #{lstm_predictor_forward.1} parent=0 // pred_region
    _
  $region5: #{lstm_predictor_forward.1} parent=0 // pred_fallthru
    _
  // Predicated region
  $region6: #{lstm_predictor_forward.1} parent=0 // pred_check
    _
  $region7: #{lstm_predictor_forward.1} parent=0 // pred_check_branch
    %19 = sbr.rel (0) target = $region9
  $region8: #{lstm_predictor_forward.1} parent=0 // pred_region
    _
  $region9: #{lstm_predictor_forward.1} parent=0 // pred_fallthru
    _
  // Predicated region
  $region10: #{lstm_predictor_forward.1} parent=0 // pred_check
    _
  $region11: #{lstm_predictor_forward.1} parent=0 // pred_check_branch
    %21 = sbr.rel (0) target = $region13
  $region12: #{lstm_predictor_forward.1} parent=0 // pred_region
    _
  $region13: #{lstm_predictor_forward.1} parent=0 // pred_fallthru
    _
  // Predicated region
  $region14: #{lstm_predictor_forward.1} parent=0 // pred_check
    _
  $region15: #{lstm_predictor_forward.1} parent=0 // pred_check_branch
    %23 = sbr.rel (0) target = $region17
  $region16: #{lstm_predictor_forward.1} parent=0 // pred_region
    _
  $region17: #{lstm_predictor_forward.1} parent=0 // pred_fallthru
    _
  // Predicated region
  $region18: #{lstm_predictor_forward.1} parent=0 // pred_check
    _
  $region19: #{lstm_predictor_forward.1} parent=0 // pred_check_branch
    %25 = sbr.rel (0) target = $region21
  $region20: #{lstm_predictor_forward.1} parent=0 // pred_region
    _
  $region21: #{lstm_predictor_forward.1} parent=0 // pred_fallthru
    _
  // Predicated region
  $region22: #{lstm_predictor_forward.1} parent=0 // pred_check
    _
  $region23: #{lstm_predictor_forward.1} parent=0 // pred_check_branch
    %27 = sbr.rel (0) target = $region25
  $region24: #{lstm_predictor_forward.1} parent=0 // pred_region
    _
  $region25: #{lstm_predictor_forward.1} parent=0 // pred_fallthru
    _
  // Predicated region
  $region26: #{lstm_predictor_forward.1} parent=0 // pred_check
    _
  $region27: #{lstm_predictor_forward.1} parent=0 // pred_check_branch
    %29 = sbr.rel (0) target = $region29
  $region28: #{lstm_predictor_forward.1} parent=0 // pred_region
    _
  $region29: #{lstm_predictor_forward.1} parent=0 // pred_fallthru
    _
  // Predicated region
  $region30: #{lstm_predictor_forward.1} parent=0 // pred_check
    _
  $region31: #{lstm_predictor_forward.1} parent=0 // pred_check_branch
    %31 = sbr.rel (0) target = $region33
  $region32: #{lstm_predictor_forward.1} parent=0 // pred_region
    _
  $region33: #{lstm_predictor_forward.1} parent=0 // pred_fallthru
    _
  // Predicated region
  $region34: #{lstm_predictor_forward.1} parent=0 // pred_check
    _
  $region35: #{lstm_predictor_forward.1} parent=0 // pred_check_branch
    %33 = sbr.rel (0) target = $region37
  $region36: #{lstm_predictor_forward.1} parent=0 // pred_region
    _
  $region37: #{lstm_predictor_forward.1} parent=0 // pred_fallthru
    _
  %v35 = vld [vmem:[%s1] sm:$0xf]
  %v36 = vld [vmem:[%s2] sm:$0xf]
  %v37 = vld [vmem:[%s2 + $0x4] sm:$0xf]
  %v38 = vld [vmem:[%s2 + $0x8] sm:$0xf]
  %v39 = vld [vmem:[%s2 + $0xc] sm:$0xf]
  %v40 = vld [vmem:[%s3] sm:$0x1]
  %v41 = vld [vmem:[%s0] sm:$0xff]
  %v42 = vld [vmem:[%s0 + $0x8] sm:$0xff]
  %v43 = vld [vmem:[%s0 + $0x10] sm:$0xff]
  %v44 = vld [vmem:[%s0 + $0x18] sm:$0xff]
  %v45 = vld [vmem:[%s0 + $0x20] sm:$0xff]
  %v46 = vld [vmem:[%s0 + $0x28] sm:$0xff]
  %v47 = vld [vmem:[%s0 + $0x30] sm:$0xff]
  %v48 = vld [vmem:[%s0 + $0x38] sm:$0xff]
  %v49 = vpack.c.bf16 %v42, %v41
  %v50 = vpack.c.bf16 %v44, %v43
  %v51 = vpack.c.bf16 %v46, %v45
  %v52 = vpack.c.bf16 %v48, %v47
  %v54 = vlaneseq
  %v55 = vshrl.u32 %v54, 7
  %v56 = vsub.s32 0, %v55
  %v57 = vrot.slane %v40, %v56
  %vm59 = vcmask 64512
  %v61 = vsel %vm59, %v49, 0
  %v64 = vsel %vm59, %v50, 0
  %v67 = vsel %vm59, %v51, 0
  %v70 = vsel %vm59, %v52, 0
  %vm72 = vcmask 1043456
  %v74 = vsel %vm72, %v35, 0
  %76 = vmatprep.subr.bf16.mxu0 0
  %77 = vmatpush1.bf16.msra.mxu0 %v74
  %78 = vmatprep.subr.bf16.mxu0 0
  %79 = vmatpush1.bf16.msra.mxu0 0
  %80 = vmatprep.subr.bf16.mxu0 0
  %81 = vmatpush1.bf16.msra.mxu0 0
  %82 = vmatprep.subr.bf16.mxu0 0
  %83 = vmatpush1.bf16.msra.mxu0 0
  %84 = vmatprep.subr.bf16.mxu0 0
  %85 = vmatpush1.bf16.msra.mxu0 0
  %86 = vmatprep.subr.bf16.mxu0 0
  %87 = vmatpush1.bf16.msra.mxu0 0
  %88 = vmatprep.subr.bf16.mxu0 0
  %89 = vmatpush1.bf16.msra.mxu0 0
  %90 = vmatprep.subr.bf16.mxu0 0
  %91 = vmatpush1.bf16.msra.mxu0 0
  %92 = vmatprep.subr.bf16.mxu0 0
  %93 = vmatpush1.bf16.msra.mxu0 0
  %94 = vmatprep.subr.bf16.mxu0 0
  %95 = vmatpush1.bf16.msra.mxu0 0
  %96 = vmatprep.subr.bf16.mxu0 0
  %97 = vmatpush1.bf16.msra.mxu0 0
  %98 = vmatprep.subr.bf16.mxu0 0
  %99 = vmatpush1.bf16.msra.mxu0 0
  %100 = vmatprep.subr.bf16.mxu0 0
  %101 = vmatpush1.bf16.msra.mxu0 0
  %102 = vmatprep.subr.bf16.mxu0 0
  %103 = vmatpush1.bf16.msra.mxu0 0
  %104 = vmatprep.subr.bf16.mxu0 0
  %105 = vmatpush1.bf16.msra.mxu0 0
  %106 = vmatprep.subr.bf16.mxu0 0
  %107 = vmatpush1.bf16.msra.mxu0 0
  %108 = vmatprep.mubr.bf16.mxu0 0
  %109 = vmatmul.mubr.bf16.gmra.mrb[0].mxu0 %v61
  %v110 = vpop.f32.mrb[0].mxu0
  %v111 = vadd.f32 %v57, %v110
  %v112 = vpop.f32.mrb[0].mxu0
  %v113 = vpop.f32.mrb[0].mxu0
  %v114 = vadd.f32 %v57, %v113
  %v115 = vpop.f32.mrb[0].mxu0
  %116 = vmatprep.mubr.bf16.mxu0 0
  %117 = vmatmul.mubr.bf16.gmra.mrb[0].mxu0 %v64
  %v118 = vpop.f32.mrb[0].mxu0
  %v119 = vadd.f32 %v57, %v118
  %v120 = vpop.f32.mrb[0].mxu0
  %v121 = vpop.f32.mrb[0].mxu0
  %v122 = vadd.f32 %v57, %v121
  %v123 = vpop.f32.mrb[0].mxu0
  %124 = vmatprep.mubr.bf16.mxu0 0
  %125 = vmatmul.mubr.bf16.gmra.mrb[0].mxu0 %v67
  %v126 = vpop.f32.mrb[0].mxu0
  %v127 = vadd.f32 %v57, %v126
  %v128 = vpop.f32.mrb[0].mxu0
  %v129 = vpop.f32.mrb[0].mxu0
  %v130 = vadd.f32 %v57, %v129
  %v131 = vpop.f32.mrb[0].mxu0
  %132 = vmatprep.mubr.bf16.mxu0 0
  %133 = vmatmul.mubr.bf16.gmra.mrb[0].mxu0 %v70
  %v134 = vpop.f32.mrb[0].mxu0
  %v135 = vadd.f32 %v57, %v134
  %v136 = vpop.f32.mrb[0].mxu0
  %v137 = vpop.f32.mrb[0].mxu0
  %v138 = vadd.f32 %v57, %v137
  %v139 = vpop.f32.mrb[0].mxu0
  %140 = vdwg.mxu0
  %141 = vst [vmem:[#allocation2] sm:$0xff] %v111
  %142 = vst [vmem:[#allocation2 + $0x8] sm:$0xff] %v114
  %143 = vst [vmem:[#allocation2 + $0x10] sm:$0xff] %v119
  %144 = vst [vmem:[#allocation2 + $0x18] sm:$0xff] %v122
  %145 = vst [vmem:[#allocation2 + $0x20] sm:$0xff] %v127
  %146 = vst [vmem:[#allocation2 + $0x28] sm:$0xff] %v130
  %147 = vst [vmem:[#allocation2 + $0x30] sm:$0xff] %v135
  %148 = vst [vmem:[#allocation2 + $0x38] sm:$0xff] %v138
  %v149 = vld [vmem:[#allocation2] sm:$0xff]
  %v154 = vunpack.c.l.b16 %v36
  %v155 = vunpack.c.l.b16 %v37
  %v156 = vunpack.c.l.b16 %v38
  %v157 = vunpack.c.l.b16 %v39
  %v158 = vpack.c.b16 %v155, %v154
  %v159 = vpack.c.b16 %v157, %v156
  %vm162 = vcmask 261120
  %v164 = vsel %vm162, 0, 0
  %166 = vmatprep.subr.bf16.mxu0 0
  %167 = vmatpush1.bf16.msra.mxu0 %v158
  %168 = vmatprep.subr.bf16.mxu0 0
  %169 = vmatpush1.bf16.msra.mxu0 %v159
  %170 = vmatprep.subr.bf16.mxu0 0
  %171 = vmatpush1.bf16.msra.mxu0 0
  %172 = vmatprep.subr.bf16.mxu0 0
  %173 = vmatpush1.bf16.msra.mxu0 0
  %174 = vmatprep.subr.bf16.mxu0 0
  %175 = vmatpush1.bf16.msra.mxu0 0
  %176 = vmatprep.subr.bf16.mxu0 0
  %177 = vmatpush1.bf16.msra.mxu0 0
  %178 = vmatprep.subr.bf16.mxu0 0
  %179 = vmatpush1.bf16.msra.mxu0 0
  %180 = vmatprep.subr.bf16.mxu0 0
  %181 = vmatpush1.bf16.msra.mxu0 0
  %182 = vmatprep.subr.bf16.mxu0 0
  %183 = vmatpush1.bf16.msra.mxu0 0
  %184 = vmatprep.subr.bf16.mxu0 0
  %185 = vmatpush1.bf16.msra.mxu0 0
  %186 = vmatprep.subr.bf16.mxu0 0
  %187 = vmatpush1.bf16.msra.mxu0 0
  %188 = vmatprep.subr.bf16.mxu0 0
  %189 = vmatpush1.bf16.msra.mxu0 0
  %190 = vmatprep.subr.bf16.mxu0 0
  %191 = vmatpush1.bf16.msra.mxu0 0
  %192 = vmatprep.subr.bf16.mxu0 0
  %193 = vmatpush1.bf16.msra.mxu0 0
  %194 = vmatprep.subr.bf16.mxu0 0
  %195 = vmatpush1.bf16.msra.mxu0 0
  %196 = vmatprep.subr.bf16.mxu0 0
  %197 = vmatpush1.bf16.msra.mxu0 0
  %198 = vmatprep.mubr.bf16.mxu0 0
  %199 = vmatmul.mubr.bf16.gmra.mrb[0].mxu0 %v164
  %v200 = vpop.f32.mrb[0].mxu0
  %v201 = vadd.f32 0.0, %v200
  %v202 = vpop.f32.mrb[0].mxu0
  %v203 = vpop.f32.mrb[0].mxu0
  %v204 = vpop.f32.mrb[0].mxu0
  %205 = vdwg.mxu0
  %v206 = vadd.f32 %v149, %v201
  %v207 = vtanh.pop %v206
  %v208 = vmul.f32 %v207, 0.5
  %v209 = vadd.f32 %v208, 0.5
  %v210 = vmul.f32 %v209, 0.0
  %212 = vrot.lane.b32.xlu0 %v207, 64
  %v213 = vpop.permute.xlu0 %212
  %v215 = vmul.f32 %v209, %v213
  %217 = vrot.lane.b32.xlu0 %v215, 32
  %v218 = vpop.permute.xlu0 %217
  %v220 = vadd.f32 %v210, %v218
  %v221 = vtanh.pop %v220
  %223 = vrot.lane.b32.xlu0 %v221, 64
  %v224 = vpop.permute.xlu0 %223
  %v226 = vmul.f32 %v209, %v224
  %228 = vrot.lane.b32.xlu0 %v226, 32
  %v229 = vpop.permute.xlu0 %228
  %231 = vst.msk [vmem:[#allocation3] sm:$0xff] %vm162, %v229
  %v232 = vld [vmem:[#allocation2 + $0x8] sm:$0xff]
  %v233 = vpack.c.bf16 %v226, %v226
  %235 = vrot.lane.b32.xlu0 %v233, 32
  %v236 = vpop.permute.xlu0 %235
  %v238 = vsel %vm162, %v236, 0
  %240 = vmatprep.subr.bf16.mxu0 0
  %241 = vmatpush1.bf16.msra.mxu0 %v158
  %242 = vmatprep.subr.bf16.mxu0 0
  %243 = vmatpush1.bf16.msra.mxu0 %v159
  %244 = vmatprep.subr.bf16.mxu0 0
  %245 = vmatpush1.bf16.msra.mxu0 0
  %246 = vmatprep.subr.bf16.mxu0 0
  %247 = vmatpush1.bf16.msra.mxu0 0
  %248 = vmatprep.subr.bf16.mxu0 0
  %249 = vmatpush1.bf16.msra.mxu0 0
  %250 = vmatprep.subr.bf16.mxu0 0
  %251 = vmatpush1.bf16.msra.mxu0 0
  %252 = vmatprep.subr.bf16.mxu0 0
  %253 = vmatpush1.bf16.msra.mxu0 0
  %254 = vmatprep.subr.bf16.mxu0 0
  %255 = vmatpush1.bf16.msra.mxu0 0
  %256 = vmatprep.subr.bf16.mxu0 0
  %257 = vmatpush1.bf16.msra.mxu0 0
  %258 = vmatprep.subr.bf16.mxu0 0
  %259 = vmatpush1.bf16.msra.mxu0 0
  %260 = vmatprep.subr.bf16.mxu0 0
  %261 = vmatpush1.bf16.msra.mxu0 0
  %262 = vmatprep.subr.bf16.mxu0 0
  %263 = vmatpush1.bf16.msra.mxu0 0
  %264 = vmatprep.subr.bf16.mxu0 0
  %265 = vmatpush1.bf16.msra.mxu0 0
  %266 = vmatprep.subr.bf16.mxu0 0
  %267 = vmatpush1.bf16.msra.mxu0 0
  %268 = vmatprep.subr.bf16.mxu0 0
  %269 = vmatpush1.bf16.msra.mxu0 0
  %270 = vmatprep.subr.bf16.mxu0 0
  %271 = vmatpush1.bf16.msra.mxu0 0
  %272 = vmatprep.mubr.bf16.mxu0 0
  %273 = vmatmul.mubr.bf16.gmra.mrb[0].mxu0 %v238
  %v274 = vpop.f32.mrb[0].mxu0
  %v275 = vadd.f32 0.0, %v274
  %v276 = vpop.f32.mrb[0].mxu0
  %v277 = vpop.f32.mrb[0].mxu0
  %v278 = vpop.f32.mrb[0].mxu0
  %279 = vdwg.mxu0
  %v280 = vadd.f32 %v232, %v275
  %v281 = vtanh.pop %v280
  %v282 = vmul.f32 %v281, 0.5
  %v283 = vadd.f32 %v282, 0.5
  %v284 = vmul.f32 %v283, %v220
  %286 = vrot.lane.b32.xlu0 %v281, 64
  %v287 = vpop.permute.xlu0 %286
  %v289 = vmul.f32 %v283, %v287
  %291 = vrot.lane.b32.xlu0 %v289, 32
  %v292 = vpop.permute.xlu0 %291
  %v294 = vadd.f32 %v284, %v292
  %v295 = vtanh.pop %v294
  %297 = vrot.lane.b32.xlu0 %v295, 64
  %v298 = vpop.permute.xlu0 %297
  %v300 = vmul.f32 %v283, %v298
  %302 = vrot.lane.b32.xlu0 %v300, 32
  %v303 = vpop.permute.xlu0 %302
  %305 = vst.msk [vmem:[#allocation3 + $0x8] sm:$0xff] %vm162, %v303
  %v306 = vld [vmem:[#allocation2 + $0x10] sm:$0xff]
  %v307 = vpack.c.bf16 %v300, %v300
  %309 = vrot.lane.b32.xlu0 %v307, 32
  %v310 = vpop.permute.xlu0 %309
  %v312 = vsel %vm162, %v310, 0
  %314 = vmatprep.subr.bf16.mxu0 0
  %315 = vmatpush1.bf16.msra.mxu0 %v158
  %316 = vmatprep.subr.bf16.mxu0 0
  %317 = vmatpush1.bf16.msra.mxu0 %v159
  %318 = vmatprep.subr.bf16.mxu0 0
  %319 = vmatpush1.bf16.msra.mxu0 0
  %320 = vmatprep.subr.bf16.mxu0 0
  %321 = vmatpush1.bf16.msra.mxu0 0
  %322 = vmatprep.subr.bf16.mxu0 0
  %323 = vmatpush1.bf16.msra.mxu0 0
  %324 = vmatprep.subr.bf16.mxu0 0
  %325 = vmatpush1.bf16.msra.mxu0 0
  %326 = vmatprep.subr.bf16.mxu0 0
  %327 = vmatpush1.bf16.msra.mxu0 0
  %328 = vmatprep.subr.bf16.mxu0 0
  %329 = vmatpush1.bf16.msra.mxu0 0
  %330 = vmatprep.subr.bf16.mxu0 0
  %331 = vmatpush1.bf16.msra.mxu0 0
  %332 = vmatprep.subr.bf16.mxu0 0
  %333 = vmatpush1.bf16.msra.mxu0 0
  %334 = vmatprep.subr.bf16.mxu0 0
  %335 = vmatpush1.bf16.msra.mxu0 0
  %336 = vmatprep.subr.bf16.mxu0 0
  %337 = vmatpush1.bf16.msra.mxu0 0
  %338 = vmatprep.subr.bf16.mxu0 0
  %339 = vmatpush1.bf16.msra.mxu0 0
  %340 = vmatprep.subr.bf16.mxu0 0
  %341 = vmatpush1.bf16.msra.mxu0 0
  %342 = vmatprep.subr.bf16.mxu0 0
  %343 = vmatpush1.bf16.msra.mxu0 0
  %344 = vmatprep.subr.bf16.mxu0 0
  %345 = vmatpush1.bf16.msra.mxu0 0
  %346 = vmatprep.mubr.bf16.mxu0 0
  %347 = vmatmul.mubr.bf16.gmra.mrb[0].mxu0 %v312
  %v348 = vpop.f32.mrb[0].mxu0
  %v349 = vadd.f32 0.0, %v348
  %v350 = vpop.f32.mrb[0].mxu0
  %v351 = vpop.f32.mrb[0].mxu0
  %v352 = vpop.f32.mrb[0].mxu0
  %353 = vdwg.mxu0
  %v354 = vadd.f32 %v306, %v349
  %v355 = vtanh.pop %v354
  %v356 = vmul.f32 %v355, 0.5
  %v357 = vadd.f32 %v356, 0.5
  %v358 = vmul.f32 %v357, %v294
  %360 = vrot.lane.b32.xlu0 %v355, 64
  %v361 = vpop.permute.xlu0 %360
  %v363 = vmul.f32 %v357, %v361
  %365 = vrot.lane.b32.xlu0 %v363, 32
  %v366 = vpop.permute.xlu0 %365
  %v368 = vadd.f32 %v358, %v366
  %v369 = vtanh.pop %v368
  %371 = vrot.lane.b32.xlu0 %v369, 64
  %v372 = vpop.permute.xlu0 %371
  %v374 = vmul.f32 %v357, %v372
  %376 = vrot.lane.b32.xlu0 %v374, 32
  %v377 = vpop.permute.xlu0 %376
  %379 = vst.msk [vmem:[#allocation3 + $0x10] sm:$0xff] %vm162, %v377
  %v380 = vld [vmem:[#allocation2 + $0x18] sm:$0xff]
  %v381 = vpack.c.bf16 %v374, %v374
  %383 = vrot.lane.b32.xlu0 %v381, 32
  %v384 = vpop.permute.xlu0 %383
  %v386 = vsel %vm162, %v384, 0
  %388 = vmatprep.subr.bf16.mxu0 0
  %389 = vmatpush1.bf16.msra.mxu0 %v158
  %390 = vmatprep.subr.bf16.mxu0 0
  %391 = vmatpush1.bf16.msra.mxu0 %v159
  %392 = vmatprep.subr.bf16.mxu0 0
  %393 = vmatpush1.bf16.msra.mxu0 0
  %394 = vmatprep.subr.bf16.mxu0 0
  %395 = vmatpush1.bf16.msra.mxu0 0
  %396 = vmatprep.subr.bf16.mxu0 0
  %397 = vmatpush1.bf16.msra.mxu0 0
  %398 = vmatprep.subr.bf16.mxu0 0
  %399 = vmatpush1.bf16.msra.mxu0 0
  %400 = vmatprep.subr.bf16.mxu0 0
  %401 = vmatpush1.bf16.msra.mxu0 0
  %402 = vmatprep.subr.bf16.mxu0 0
  %403 = vmatpush1.bf16.msra.mxu0 0
  %404 = vmatprep.subr.bf16.mxu0 0
  %405 = vmatpush1.bf16.msra.mxu0 0
  %406 = vmatprep.subr.bf16.mxu0 0
  %407 = vmatpush1.bf16.msra.mxu0 0
  %408 = vmatprep.subr.bf16.mxu0 0
  %409 = vmatpush1.bf16.msra.mxu0 0
  %410 = vmatprep.subr.bf16.mxu0 0
  %411 = vmatpush1.bf16.msra.mxu0 0
  %412 = vmatprep.subr.bf16.mxu0 0
  %413 = vmatpush1.bf16.msra.mxu0 0
  %414 = vmatprep.subr.bf16.mxu0 0
  %415 = vmatpush1.bf16.msra.mxu0 0
  %416 = vmatprep.subr.bf16.mxu0 0
  %417 = vmatpush1.bf16.msra.mxu0 0
  %418 = vmatprep.subr.bf16.mxu0 0
  %419 = vmatpush1.bf16.msra.mxu0 0
  %420 = vmatprep.mubr.bf16.mxu0 0
  %421 = vmatmul.mubr.bf16.gmra.mrb[0].mxu0 %v386
  %v422 = vpop.f32.mrb[0].mxu0
  %v423 = vadd.f32 0.0, %v422
  %v424 = vpop.f32.mrb[0].mxu0
  %v425 = vpop.f32.mrb[0].mxu0
  %v426 = vpop.f32.mrb[0].mxu0
  %427 = vdwg.mxu0
  %v428 = vadd.f32 %v380, %v423
  %v429 = vtanh.pop %v428
  %v430 = vmul.f32 %v429, 0.5
  %v431 = vadd.f32 %v430, 0.5
  %v432 = vmul.f32 %v431, %v368
  %434 = vrot.lane.b32.xlu0 %v429, 64
  %v435 = vpop.permute.xlu0 %434
  %v437 = vmul.f32 %v431, %v435
  %439 = vrot.lane.b32.xlu0 %v437, 32
  %v440 = vpop.permute.xlu0 %439
  %v442 = vadd.f32 %v432, %v440
  %v443 = vtanh.pop %v442
  %445 = vrot.lane.b32.xlu0 %v443, 64
  %v446 = vpop.permute.xlu0 %445
  %v448 = vmul.f32 %v431, %v446
  %450 = vrot.lane.b32.xlu0 %v448, 32
  %v451 = vpop.permute.xlu0 %450
  %453 = vst.msk [vmem:[#allocation3 + $0x18] sm:$0xff] %vm162, %v451
  %v454 = vld [vmem:[#allocation2 + $0x20] sm:$0xff]
  %v455 = vpack.c.bf16 %v448, %v448
  %457 = vrot.lane.b32.xlu0 %v455, 32
  %v458 = vpop.permute.xlu0 %457
  %v460 = vsel %vm162, %v458, 0
  %462 = vmatprep.subr.bf16.mxu0 0
  %463 = vmatpush1.bf16.msra.mxu0 %v158
  %464 = vmatprep.subr.bf16.mxu0 0
  %465 = vmatpush1.bf16.msra.mxu0 %v159
  %466 = vmatprep.subr.bf16.mxu0 0
  %467 = vmatpush1.bf16.msra.mxu0 0
  %468 = vmatprep.subr.bf16.mxu0 0
  %469 = vmatpush1.bf16.msra.mxu0 0
  %470 = vmatprep.subr.bf16.mxu0 0
  %471 = vmatpush1.bf16.msra.mxu0 0
  %472 = vmatprep.subr.bf16.mxu0 0
  %473 = vmatpush1.bf16.msra.mxu0 0
  %474 = vmatprep.subr.bf16.mxu0 0
  %475 = vmatpush1.bf16.msra.mxu0 0
  %476 = vmatprep.subr.bf16.mxu0 0
  %477 = vmatpush1.bf16.msra.mxu0 0
  %478 = vmatprep.subr.bf16.mxu0 0
  %479 = vmatpush1.bf16.msra.mxu0 0
  %480 = vmatprep.subr.bf16.mxu0 0
  %481 = vmatpush1.bf16.msra.mxu0 0
  %482 = vmatprep.subr.bf16.mxu0 0
  %483 = vmatpush1.bf16.msra.mxu0 0
  %484 = vmatprep.subr.bf16.mxu0 0
  %485 = vmatpush1.bf16.msra.mxu0 0
  %486 = vmatprep.subr.bf16.mxu0 0
  %487 = vmatpush1.bf16.msra.mxu0 0
  %488 = vmatprep.subr.bf16.mxu0 0
  %489 = vmatpush1.bf16.msra.mxu0 0
  %490 = vmatprep.subr.bf16.mxu0 0
  %491 = vmatpush1.bf16.msra.mxu0 0
  %492 = vmatprep.subr.bf16.mxu0 0
  %493 = vmatpush1.bf16.msra.mxu0 0
  %494 = vmatprep.mubr.bf16.mxu0 0
  %495 = vmatmul.mubr.bf16.gmra.mrb[0].mxu0 %v460
  %v496 = vpop.f32.mrb[0].mxu0
  %v497 = vadd.f32 0.0, %v496
  %v498 = vpop.f32.mrb[0].mxu0
  %v499 = vpop.f32.mrb[0].mxu0
  %v500 = vpop.f32.mrb[0].mxu0
  %501 = vdwg.mxu0
  %v502 = vadd.f32 %v454, %v497
  %v503 = vtanh.pop %v502
  %v504 = vmul.f32 %v503, 0.5
  %v505 = vadd.f32 %v504, 0.5
  %v506 = vmul.f32 %v505, %v442
  %508 = vrot.lane.b32.xlu0 %v503, 64
  %v509 = vpop.permute.xlu0 %508
  %v511 = vmul.f32 %v505, %v509
  %513 = vrot.lane.b32.xlu0 %v511, 32
  %v514 = vpop.permute.xlu0 %513
  %v516 = vadd.f32 %v506, %v514
  %v517 = vtanh.pop %v516
  %519 = vrot.lane.b32.xlu0 %v517, 64
  %v520 = vpop.permute.xlu0 %519
  %v522 = vmul.f32 %v505, %v520
  %524 = vrot.lane.b32.xlu0 %v522, 32
  %v525 = vpop.permute.xlu0 %524
  %527 = vst.msk [vmem:[#allocation3 + $0x20] sm:$0xff] %vm162, %v525
  %v528 = vld [vmem:[#allocation2 + $0x28] sm:$0xff]
  %v529 = vpack.c.bf16 %v522, %v522
  %531 = vrot.lane.b32.xlu0 %v529, 32
  %v532 = vpop.permute.xlu0 %531
  %v534 = vsel %vm162, %v532, 0
  %536 = vmatprep.subr.bf16.mxu0 0
  %537 = vmatpush1.bf16.msra.mxu0 %v158
  %538 = vmatprep.subr.bf16.mxu0 0
  %539 = vmatpush1.bf16.msra.mxu0 %v159
  %540 = vmatprep.subr.bf16.mxu0 0
  %541 = vmatpush1.bf16.msra.mxu0 0
  %542 = vmatprep.subr.bf16.mxu0 0
  %543 = vmatpush1.bf16.msra.mxu0 0
  %544 = vmatprep.subr.bf16.mxu0 0
  %545 = vmatpush1.bf16.msra.mxu0 0
  %546 = vmatprep.subr.bf16.mxu0 0
  %547 = vmatpush1.bf16.msra.mxu0 0
  %548 = vmatprep.subr.bf16.mxu0 0
  %549 = vmatpush1.bf16.msra.mxu0 0
  %550 = vmatprep.subr.bf16.mxu0 0
  %551 = vmatpush1.bf16.msra.mxu0 0
  %552 = vmatprep.subr.bf16.mxu0 0
  %553 = vmatpush1.bf16.msra.mxu0 0
  %554 = vmatprep.subr.bf16.mxu0 0
  %555 = vmatpush1.bf16.msra.mxu0 0
  %556 = vmatprep.subr.bf16.mxu0 0
  %557 = vmatpush1.bf16.msra.mxu0 0
  %558 = vmatprep.subr.bf16.mxu0 0
  %559 = vmatpush1.bf16.msra.mxu0 0
  %560 = vmatprep.subr.bf16.mxu0 0
  %561 = vmatpush1.bf16.msra.mxu0 0
  %562 = vmatprep.subr.bf16.mxu0 0
  %563 = vmatpush1.bf16.msra.mxu0 0
  %564 = vmatprep.subr.bf16.mxu0 0
  %565 = vmatpush1.bf16.msra.mxu0 0
  %566 = vmatprep.subr.bf16.mxu0 0
  %567 = vmatpush1.bf16.msra.mxu0 0
  %568 = vmatprep.mubr.bf16.mxu0 0
  %569 = vmatmul.mubr.bf16.gmra.mrb[0].mxu0 %v534
  %v570 = vpop.f32.mrb[0].mxu0
  %v571 = vadd.f32 0.0, %v570
  %v572 = vpop.f32.mrb[0].mxu0
  %v573 = vpop.f32.mrb[0].mxu0
  %v574 = vpop.f32.mrb[0].mxu0
  %575 = vdwg.mxu0
  %v576 = vadd.f32 %v528, %v571
  %v577 = vtanh.pop %v576
  %v578 = vmul.f32 %v577, 0.5
  %v579 = vadd.f32 %v578, 0.5
  %v580 = vmul.f32 %v579, %v516
  %582 = vrot.lane.b32.xlu0 %v577, 64
  %v583 = vpop.permute.xlu0 %582
  %v585 = vmul.f32 %v579, %v583
  %587 = vrot.lane.b32.xlu0 %v585, 32
  %v588 = vpop.permute.xlu0 %587
  %v590 = vadd.f32 %v580, %v588
  %v591 = vtanh.pop %v590
  %593 = vrot.lane.b32.xlu0 %v591, 64
  %v594 = vpop.permute.xlu0 %593
  %v596 = vmul.f32 %v579, %v594
  %598 = vrot.lane.b32.xlu0 %v596, 32
  %v599 = vpop.permute.xlu0 %598
  %601 = vst.msk [vmem:[#allocation3 + $0x28] sm:$0xff] %vm162, %v599
  %v602 = vld [vmem:[#allocation2 + $0x30] sm:$0xff]
  %v603 = vpack.c.bf16 %v596, %v596
  %605 = vrot.lane.b32.xlu0 %v603, 32
  %v606 = vpop.permute.xlu0 %605
  %v608 = vsel %vm162, %v606, 0
  %610 = vmatprep.subr.bf16.mxu0 0
  %611 = vmatpush1.bf16.msra.mxu0 %v158
  %612 = vmatprep.subr.bf16.mxu0 0
  %613 = vmatpush1.bf16.msra.mxu0 %v159
  %614 = vmatprep.subr.bf16.mxu0 0
  %615 = vmatpush1.bf16.msra.mxu0 0
  %616 = vmatprep.subr.bf16.mxu0 0
  %617 = vmatpush1.bf16.msra.mxu0 0
  %618 = vmatprep.subr.bf16.mxu0 0
  %619 = vmatpush1.bf16.msra.mxu0 0
  %620 = vmatprep.subr.bf16.mxu0 0
  %621 = vmatpush1.bf16.msra.mxu0 0
  %622 = vmatprep.subr.bf16.mxu0 0
  %623 = vmatpush1.bf16.msra.mxu0 0
  %624 = vmatprep.subr.bf16.mxu0 0
  %625 = vmatpush1.bf16.msra.mxu0 0
  %626 = vmatprep.subr.bf16.mxu0 0
  %627 = vmatpush1.bf16.msra.mxu0 0
  %628 = vmatprep.subr.bf16.mxu0 0
  %629 = vmatpush1.bf16.msra.mxu0 0
  %630 = vmatprep.subr.bf16.mxu0 0
  %631 = vmatpush1.bf16.msra.mxu0 0
  %632 = vmatprep.subr.bf16.mxu0 0
  %633 = vmatpush1.bf16.msra.mxu0 0
  %634 = vmatprep.subr.bf16.mxu0 0
  %635 = vmatpush1.bf16.msra.mxu0 0
  %636 = vmatprep.subr.bf16.mxu0 0
  %637 = vmatpush1.bf16.msra.mxu0 0
  %638 = vmatprep.subr.bf16.mxu0 0
  %639 = vmatpush1.bf16.msra.mxu0 0
  %640 = vmatprep.subr.bf16.mxu0 0
  %641 = vmatpush1.bf16.msra.mxu0 0
  %642 = vmatprep.mubr.bf16.mxu0 0
  %643 = vmatmul.mubr.bf16.gmra.mrb[0].mxu0 %v608
  %v644 = vpop.f32.mrb[0].mxu0
  %v645 = vadd.f32 0.0, %v644
  %v646 = vpop.f32.mrb[0].mxu0
  %v647 = vpop.f32.mrb[0].mxu0
  %v648 = vpop.f32.mrb[0].mxu0
  %649 = vdwg.mxu0
  %v650 = vadd.f32 %v602, %v645
  %v651 = vtanh.pop %v650
  %v652 = vmul.f32 %v651, 0.5
  %v653 = vadd.f32 %v652, 0.5
  %v654 = vmul.f32 %v653, %v590
  %656 = vrot.lane.b32.xlu0 %v651, 64
  %v657 = vpop.permute.xlu0 %656
  %v659 = vmul.f32 %v653, %v657
  %661 = vrot.lane.b32.xlu0 %v659, 32
  %v662 = vpop.permute.xlu0 %661
  %v664 = vadd.f32 %v654, %v662
  %v665 = vtanh.pop %v664
  %667 = vrot.lane.b32.xlu0 %v665, 64
  %v668 = vpop.permute.xlu0 %667
  %v670 = vmul.f32 %v653, %v668
  %672 = vrot.lane.b32.xlu0 %v670, 32
  %v673 = vpop.permute.xlu0 %672
  %675 = vst.msk [vmem:[#allocation3 + $0x30] sm:$0xff] %vm162, %v673
  %v676 = vld [vmem:[#allocation2 + $0x38] sm:$0xff]
  %v677 = vpack.c.bf16 %v670, %v670
  %679 = vrot.lane.b32.xlu0 %v677, 32
  %v680 = vpop.permute.xlu0 %679
  %v682 = vsel %vm162, %v680, 0
  %684 = vmatprep.subr.bf16.mxu0 0
  %685 = vmatpush1.bf16.msra.mxu0 %v158
  %686 = vmatprep.subr.bf16.mxu0 0
  %687 = vmatpush1.bf16.msra.mxu0 %v159
  %688 = vmatprep.subr.bf16.mxu0 0
  %689 = vmatpush1.bf16.msra.mxu0 0
  %690 = vmatprep.subr.bf16.mxu0 0
  %691 = vmatpush1.bf16.msra.mxu0 0
  %692 = vmatprep.subr.bf16.mxu0 0
  %693 = vmatpush1.bf16.msra.mxu0 0
  %694 = vmatprep.subr.bf16.mxu0 0
  %695 = vmatpush1.bf16.msra.mxu0 0
  %696 = vmatprep.subr.bf16.mxu0 0
  %697 = vmatpush1.bf16.msra.mxu0 0
  %698 = vmatprep.subr.bf16.mxu0 0
  %699 = vmatpush1.bf16.msra.mxu0 0
  %700 = vmatprep.subr.bf16.mxu0 0
  %701 = vmatpush1.bf16.msra.mxu0 0
  %702 = vmatprep.subr.bf16.mxu0 0
  %703 = vmatpush1.bf16.msra.mxu0 0
  %704 = vmatprep.subr.bf16.mxu0 0
  %705 = vmatpush1.bf16.msra.mxu0 0
  %706 = vmatprep.subr.bf16.mxu0 0
  %707 = vmatpush1.bf16.msra.mxu0 0
  %708 = vmatprep.subr.bf16.mxu0 0
  %709 = vmatpush1.bf16.msra.mxu0 0
  %710 = vmatprep.subr.bf16.mxu0 0
  %711 = vmatpush1.bf16.msra.mxu0 0
  %712 = vmatprep.subr.bf16.mxu0 0
  %713 = vmatpush1.bf16.msra.mxu0 0
  %714 = vmatprep.subr.bf16.mxu0 0
  %715 = vmatpush1.bf16.msra.mxu0 0
  %716 = vmatprep.mubr.bf16.mxu0 0
  %717 = vmatmul.mubr.bf16.gmra.mrb[0].mxu0 %v682
  %v718 = vpop.f32.mrb[0].mxu0
  %v719 = vadd.f32 0.0, %v718
  %v720 = vpop.f32.mrb[0].mxu0
  %v721 = vpop.f32.mrb[0].mxu0
  %v722 = vpop.f32.mrb[0].mxu0
  %723 = vdwg.mxu0
  %v724 = vadd.f32 %v676, %v719
  %v725 = vtanh.pop %v724
  %v726 = vmul.f32 %v725, 0.5
  %v727 = vadd.f32 %v726, 0.5
  %v728 = vmul.f32 %v727, %v664
  %730 = vrot.lane.b32.xlu0 %v725, 64
  %v731 = vpop.permute.xlu0 %730
  %v733 = vmul.f32 %v727, %v731
  %735 = vrot.lane.b32.xlu0 %v733, 32
  %v736 = vpop.permute.xlu0 %735
  %v738 = vadd.f32 %v728, %v736
  %v739 = vtanh.pop %v738
  %741 = vrot.lane.b32.xlu0 %v739, 64
  %v742 = vpop.permute.xlu0 %741
  %v744 = vmul.f32 %v727, %v742
  %746 = vrot.lane.b32.xlu0 %v744, 32
  %v747 = vpop.permute.xlu0 %746
  %749 = vst.msk [vmem:[#allocation3 + $0x38] sm:$0xff] %vm162, %v747
  %v750 = vld [vmem:[%s4] sm:$0xf]
  %v751 = vld [vmem:[%s4 + $0x4] sm:$0xf]
  %v752 = vld [vmem:[%s4 + $0x8] sm:$0xf]
  %v753 = vld [vmem:[%s4 + $0xc] sm:$0xf]
  %v754 = vld [vmem:[%s5] sm:$0xf]
  %v755 = vld [vmem:[%s5 + $0x4] sm:$0xf]
  %v756 = vld [vmem:[%s5 + $0x8] sm:$0xf]
  %v757 = vld [vmem:[%s5 + $0xc] sm:$0xf]
  %v758 = vld [vmem:[%s6] sm:$0x1]
  %v759 = vld [vmem:[#allocation3] sm:$0xff]
  %v760 = vld [vmem:[#allocation3 + $0x8] sm:$0xff]
  %v761 = vld [vmem:[#allocation3 + $0x10] sm:$0xff]
  %v762 = vld [vmem:[#allocation3 + $0x18] sm:$0xff]
  %v763 = vld [vmem:[#allocation3 + $0x20] sm:$0xff]
  %v764 = vld [vmem:[#allocation3 + $0x28] sm:$0xff]
  %v765 = vld [vmem:[#allocation3 + $0x30] sm:$0xff]
  %v766 = vld [vmem:[#allocation3 + $0x38] sm:$0xff]
  %v767 = vpack.c.bf16 %v760, %v759
  %v768 = vpack.c.bf16 %v762, %v761
  %v769 = vpack.c.bf16 %v764, %v763
  %v770 = vpack.c.bf16 %v766, %v765
  %v772 = vlaneseq
  %v773 = vshrl.u32 %v772, 7
  %v774 = vsub.s32 0, %v773
  %v775 = vrot.slane %v758, %v774
  %v781 = vunpack.c.l.b16 %v750
  %v782 = vunpack.c.l.b16 %v751
  %v783 = vunpack.c.l.b16 %v752
  %v784 = vunpack.c.l.b16 %v753
  %v785 = vpack.c.b16 %v782, %v781
  %v786 = vpack.c.b16 %v784, %v783
  %v790 = vsel %vm162, %v767, 0
  %v793 = vsel %vm162, %v768, 0
  %v796 = vsel %vm162, %v769, 0
  %v799 = vsel %vm162, %v770, 0
  %801 = vmatprep.subr.bf16.mxu0 0
  %802 = vmatpush1.bf16.msra.mxu0 %v785
  %803 = vmatprep.subr.bf16.mxu0 0
  %804 = vmatpush1.bf16.msra.mxu0 %v786
  %805 = vmatprep.subr.bf16.mxu0 0
  %806 = vmatpush1.bf16.msra.mxu0 0
  %807 = vmatprep.subr.bf16.mxu0 0
  %808 = vmatpush1.bf16.msra.mxu0 0
  %809 = vmatprep.subr.bf16.mxu0 0
  %810 = vmatpush1.bf16.msra.mxu0 0
  %811 = vmatprep.subr.bf16.mxu0 0
  %812 = vmatpush1.bf16.msra.mxu0 0
  %813 = vmatprep.subr.bf16.mxu0 0
  %814 = vmatpush1.bf16.msra.mxu0 0
  %815 = vmatprep.subr.bf16.mxu0 0
  %816 = vmatpush1.bf16.msra.mxu0 0
  %817 = vmatprep.subr.bf16.mxu0 0
  %818 = vmatpush1.bf16.msra.mxu0 0
  %819 = vmatprep.subr.bf16.mxu0 0
  %820 = vmatpush1.bf16.msra.mxu0 0
  %821 = vmatprep.subr.bf16.mxu0 0
  %822 = vmatpush1.bf16.msra.mxu0 0
  %823 = vmatprep.subr.bf16.mxu0 0
  %824 = vmatpush1.bf16.msra.mxu0 0
  %825 = vmatprep.subr.bf16.mxu0 0
  %826 = vmatpush1.bf16.msra.mxu0 0
  %827 = vmatprep.subr.bf16.mxu0 0
  %828 = vmatpush1.bf16.msra.mxu0 0
  %829 = vmatprep.subr.bf16.mxu0 0
  %830 = vmatpush1.bf16.msra.mxu0 0
  %831 = vmatprep.subr.bf16.mxu0 0
  %832 = vmatpush1.bf16.msra.mxu0 0
  %833 = vmatprep.mubr.bf16.mxu0 0
  %834 = vmatmul.mubr.bf16.gmra.mrb[0].mxu0 %v790
  %v835 = vpop.f32.mrb[0].mxu0
  %v836 = vadd.f32 %v775, %v835
  %v837 = vpop.f32.mrb[0].mxu0
  %v838 = vpop.f32.mrb[0].mxu0
  %v839 = vadd.f32 %v775, %v838
  %v840 = vpop.f32.mrb[0].mxu0
  %841 = vmatprep.mubr.bf16.mxu0 0
  %842 = vmatmul.mubr.bf16.gmra.mrb[0].mxu0 %v793
  %v843 = vpop.f32.mrb[0].mxu0
  %v844 = vadd.f32 %v775, %v843
  %v845 = vpop.f32.mrb[0].mxu0
  %v846 = vpop.f32.mrb[0].mxu0
  %v847 = vadd.f32 %v775, %v846
  %v848 = vpop.f32.mrb[0].mxu0
  %849 = vmatprep.mubr.bf16.mxu0 0
  %850 = vmatmul.mubr.bf16.gmra.mrb[0].mxu0 %v796
  %v851 = vpop.f32.mrb[0].mxu0
  %v852 = vadd.f32 %v775, %v851
  %v853 = vpop.f32.mrb[0].mxu0
  %v854 = vpop.f32.mrb[0].mxu0
  %v855 = vadd.f32 %v775, %v854
  %v856 = vpop.f32.mrb[0].mxu0
  %857 = vmatprep.mubr.bf16.mxu0 0
  %858 = vmatmul.mubr.bf16.gmra.mrb[0].mxu0 %v799
  %v859 = vpop.f32.mrb[0].mxu0
  %v860 = vadd.f32 %v775, %v859
  %v861 = vpop.f32.mrb[0].mxu0
  %v862 = vpop.f32.mrb[0].mxu0
  %v863 = vadd.f32 %v775, %v862
  %v864 = vpop.f32.mrb[0].mxu0
  %865 = vdwg.mxu0
  %866 = vst [vmem:[#allocation2] sm:$0xff] %v836
  %867 = vst [vmem:[#allocation2 + $0x8] sm:$0xff] %v839
  %868 = vst [vmem:[#allocation2 + $0x10] sm:$0xff] %v844
  %869 = vst [vmem:[#allocation2 + $0x18] sm:$0xff] %v847
  %870 = vst [vmem:[#allocation2 + $0x20] sm:$0xff] %v852
  %871 = vst [vmem:[#allocation2 + $0x28] sm:$0xff] %v855
  %872 = vst [vmem:[#allocation2 + $0x30] sm:$0xff] %v860
  %873 = vst [vmem:[#allocation2 + $0x38] sm:$0xff] %v863
  %v874 = vld [vmem:[#allocation2] sm:$0xff]
  %v879 = vunpack.c.l.b16 %v754
  %v880 = vunpack.c.l.b16 %v755
  %v881 = vunpack.c.l.b16 %v756
  %v882 = vunpack.c.l.b16 %v757
  %v883 = vpack.c.b16 %v880, %v879
  %v884 = vpack.c.b16 %v882, %v881
  %887 = vmatprep.subr.bf16.mxu0 0
  %888 = vmatpush1.bf16.msra.mxu0 %v883
  %889 = vmatprep.subr.bf16.mxu0 0
  %890 = vmatpush1.bf16.msra.mxu0 %v884
  %891 = vmatprep.subr.bf16.mxu0 0
  %892 = vmatpush1.bf16.msra.mxu0 0
  %893 = vmatprep.subr.bf16.mxu0 0
  %894 = vmatpush1.bf16.msra.mxu0 0
  %895 = vmatprep.subr.bf16.mxu0 0
  %896 = vmatpush1.bf16.msra.mxu0 0
  %897 = vmatprep.subr.bf16.mxu0 0
  %898 = vmatpush1.bf16.msra.mxu0 0
  %899 = vmatprep.subr.bf16.mxu0 0
  %900 = vmatpush1.bf16.msra.mxu0 0
  %901 = vmatprep.subr.bf16.mxu0 0
  %902 = vmatpush1.bf16.msra.mxu0 0
  %903 = vmatprep.subr.bf16.mxu0 0
  %904 = vmatpush1.bf16.msra.mxu0 0
  %905 = vmatprep.subr.bf16.mxu0 0
  %906 = vmatpush1.bf16.msra.mxu0 0
  %907 = vmatprep.subr.bf16.mxu0 0
  %908 = vmatpush1.bf16.msra.mxu0 0
  %909 = vmatprep.subr.bf16.mxu0 0
  %910 = vmatpush1.bf16.msra.mxu0 0
  %911 = vmatprep.subr.bf16.mxu0 0
  %912 = vmatpush1.bf16.msra.mxu0 0
  %913 = vmatprep.subr.bf16.mxu0 0
  %914 = vmatpush1.bf16.msra.mxu0 0
  %915 = vmatprep.subr.bf16.mxu0 0
  %916 = vmatpush1.bf16.msra.mxu0 0
  %917 = vmatprep.subr.bf16.mxu0 0
  %918 = vmatpush1.bf16.msra.mxu0 0
  %919 = vmatprep.mubr.bf16.mxu0 0
  %920 = vmatmul.mubr.bf16.gmra.mrb[0].mxu0 %v164
  %v921 = vpop.f32.mrb[0].mxu0
  %v922 = vadd.f32 0.0, %v921
  %v923 = vpop.f32.mrb[0].mxu0
  %v924 = vpop.f32.mrb[0].mxu0
  %v925 = vpop.f32.mrb[0].mxu0
  %926 = vdwg.mxu0
  %v927 = vadd.f32 %v874, %v922
  %v928 = vtanh.pop %v927
  %v929 = vmul.f32 %v928, 0.5
  %v930 = vadd.f32 %v929, 0.5
  %v931 = vmul.f32 %v930, 0.0
  %933 = vrot.lane.b32.xlu0 %v928, 64
  %v934 = vpop.permute.xlu0 %933
  %v936 = vmul.f32 %v930, %v934
  %938 = vrot.lane.b32.xlu0 %v936, 32
  %v939 = vpop.permute.xlu0 %938
  %v941 = vadd.f32 %v931, %v939
  %v942 = vtanh.pop %v941
  %944 = vrot.lane.b32.xlu0 %v942, 64
  %v945 = vpop.permute.xlu0 %944
  %v947 = vmul.f32 %v930, %v945
  %949 = vrot.lane.b32.xlu0 %v947, 32
  %v950 = vpop.permute.xlu0 %949
  %952 = vst.msk [vmem:[#allocation3] sm:$0xff] %vm162, %v950
  %v953 = vld [vmem:[#allocation2 + $0x8] sm:$0xff]
  %v954 = vpack.c.bf16 %v947, %v947
  %956 = vrot.lane.b32.xlu0 %v954, 32
  %v957 = vpop.permute.xlu0 %956
  %v959 = vsel %vm162, %v957, 0
  %961 = vmatprep.subr.bf16.mxu0 0
  %962 = vmatpush1.bf16.msra.mxu0 %v883
  %963 = vmatprep.subr.bf16.mxu0 0
  %964 = vmatpush1.bf16.msra.mxu0 %v884
  %965 = vmatprep.subr.bf16.mxu0 0
  %966 = vmatpush1.bf16.msra.mxu0 0
  %967 = vmatprep.subr.bf16.mxu0 0
  %968 = vmatpush1.bf16.msra.mxu0 0
  %969 = vmatprep.subr.bf16.mxu0 0
  %970 = vmatpush1.bf16.msra.mxu0 0
  %971 = vmatprep.subr.bf16.mxu0 0
  %972 = vmatpush1.bf16.msra.mxu0 0
  %973 = vmatprep.subr.bf16.mxu0 0
  %974 = vmatpush1.bf16.msra.mxu0 0
  %975 = vmatprep.subr.bf16.mxu0 0
  %976 = vmatpush1.bf16.msra.mxu0 0
  %977 = vmatprep.subr.bf16.mxu0 0
  %978 = vmatpush1.bf16.msra.mxu0 0
  %979 = vmatprep.subr.bf16.mxu0 0
  %980 = vmatpush1.bf16.msra.mxu0 0
  %981 = vmatprep.subr.bf16.mxu0 0
  %982 = vmatpush1.bf16.msra.mxu0 0
  %983 = vmatprep.subr.bf16.mxu0 0
  %984 = vmatpush1.bf16.msra.mxu0 0
  %985 = vmatprep.subr.bf16.mxu0 0
  %986 = vmatpush1.bf16.msra.mxu0 0
  %987 = vmatprep.subr.bf16.mxu0 0
  %988 = vmatpush1.bf16.msra.mxu0 0
  %989 = vmatprep.subr.bf16.mxu0 0
  %990 = vmatpush1.bf16.msra.mxu0 0
  %991 = vmatprep.subr.bf16.mxu0 0
  %992 = vmatpush1.bf16.msra.mxu0 0
  %993 = vmatprep.mubr.bf16.mxu0 0
  %994 = vmatmul.mubr.bf16.gmra.mrb[0].mxu0 %v959
  %v995 = vpop.f32.mrb[0].mxu0
  %v996 = vadd.f32 0.0, %v995
  %v997 = vpop.f32.mrb[0].mxu0
  %v998 = vpop.f32.mrb[0].mxu0
  %v999 = vpop.f32.mrb[0].mxu0
  %1000 = vdwg.mxu0
  %v1001 = vadd.f32 %v953, %v996
  %v1002 = vtanh.pop %v1001
  %v1003 = vmul.f32 %v1002, 0.5
  %v1004 = vadd.f32 %v1003, 0.5
  %v1005 = vmul.f32 %v1004, %v941
  %1007 = vrot.lane.b32.xlu0 %v1002, 64
  %v1008 = vpop.permute.xlu0 %1007
  %v1010 = vmul.f32 %v1004, %v1008
  %1012 = vrot.lane.b32.xlu0 %v1010, 32
  %v1013 = vpop.permute.xlu0 %1012
  %v1015 = vadd.f32 %v1005, %v1013
  %v1016 = vtanh.pop %v1015
  %1018 = vrot.lane.b32.xlu0 %v1016, 64
  %v1019 = vpop.permute.xlu0 %1018
  %v1021 = vmul.f32 %v1004, %v1019
  %1023 = vrot.lane.b32.xlu0 %v1021, 32
  %v1024 = vpop.permute.xlu0 %1023
  %1026 = vst.msk [vmem:[#allocation3 + $0x8] sm:$0xff] %vm162, %v1024
  %v1027 = vld [vmem:[#allocation2 + $0x10] sm:$0xff]
  %v1028 = vpack.c.bf16 %v1021, %v1021
  %1030 = vrot.lane.b32.xlu0 %v1028, 32
  %v1031 = vpop.permute.xlu0 %1030
  %v1033 = vsel %vm162, %v1031, 0
  %1035 = vmatprep.subr.bf16.mxu0 0
  %1036 = vmatpush1.bf16.msra.mxu0 %v883
  %1037 = vmatprep.subr.bf16.mxu0 0
  %1038 = vmatpush1.bf16.msra.mxu0 %v884
  %1039 = vmatprep.subr.bf16.mxu0 0
  %1040 = vmatpush1.bf16.msra.mxu0 0
  %1041 = vmatprep.subr.bf16.mxu0 0
  %1042 = vmatpush1.bf16.msra.mxu0 0
  %1043 = vmatprep.subr.bf16.mxu0 0
  %1044 = vmatpush1.bf16.msra.mxu0 0
  %1045 = vmatprep.subr.bf16.mxu0 0
  %1046 = vmatpush1.bf16.msra.mxu0 0
  %1047 = vmatprep.subr.bf16.mxu0 0
  %1048 = vmatpush1.bf16.msra.mxu0 0
  %1049 = vmatprep.subr.bf16.mxu0 0
  %1050 = vmatpush1.bf16.msra.mxu0 0
  %1051 = vmatprep.subr.bf16.mxu0 0
  %1052 = vmatpush1.bf16.msra.mxu0 0
  %1053 = vmatprep.subr.bf16.mxu0 0
  %1054 = vmatpush1.bf16.msra.mxu0 0
  %1055 = vmatprep.subr.bf16.mxu0 0
  %1056 = vmatpush1.bf16.msra.mxu0 0
  %1057 = vmatprep.subr.bf16.mxu0 0
  %1058 = vmatpush1.bf16.msra.mxu0 0
  %1059 = vmatprep.subr.bf16.mxu0 0
  %1060 = vmatpush1.bf16.msra.mxu0 0
  %1061 = vmatprep.subr.bf16.mxu0 0
  %1062 = vmatpush1.bf16.msra.mxu0 0
  %1063 = vmatprep.subr.bf16.mxu0 0
  %1064 = vmatpush1.bf16.msra.mxu0 0
  %1065 = vmatprep.subr.bf16.mxu0 0
  %1066 = vmatpush1.bf16.msra.mxu0 0
  %1067 = vmatprep.mubr.bf16.mxu0 0
  %1068 = vmatmul.mubr.bf16.gmra.mrb[0].mxu0 %v1033
  %v1069 = vpop.f32.mrb[0].mxu0
  %v1070 = vadd.f32 0.0, %v1069
  %v1071 = vpop.f32.mrb[0].mxu0
  %v1072 = vpop.f32.mrb[0].mxu0
  %v1073 = vpop.f32.mrb[0].mxu0
  %1074 = vdwg.mxu0
  %v1075 = vadd.f32 %v1027, %v1070
  %v1076 = vtanh.pop %v1075
  %v1077 = vmul.f32 %v1076, 0.5
  %v1078 = vadd.f32 %v1077, 0.5
  %v1079 = vmul.f32 %v1078, %v1015
  %1081 = vrot.lane.b32.xlu0 %v1076, 64
  %v1082 = vpop.permute.xlu0 %1081
  %v1084 = vmul.f32 %v1078, %v1082
  %1086 = vrot.lane.b32.xlu0 %v1084, 32
  %v1087 = vpop.permute.xlu0 %1086
  %v1089 = vadd.f32 %v1079, %v1087
  %v1090 = vtanh.pop %v1089
  %1092 = vrot.lane.b32.xlu0 %v1090, 64
  %v1093 = vpop.permute.xlu0 %1092
  %v1095 = vmul.f32 %v1078, %v1093
  %1097 = vrot.lane.b32.xlu0 %v1095, 32
  %v1098 = vpop.permute.xlu0 %1097
  %1100 = vst.msk [vmem:[#allocation3 + $0x10] sm:$0xff] %vm162, %v1098
  %v1101 = vld [vmem:[#allocation2 + $0x18] sm:$0xff]
  %v1102 = vpack.c.bf16 %v1095, %v1095
  %1104 = vrot.lane.b32.xlu0 %v1102, 32
  %v1105 = vpop.permute.xlu0 %1104
  %v1107 = vsel %vm162, %v1105, 0
  %1109 = vmatprep.subr.bf16.mxu0 0
  %1110 = vmatpush1.bf16.msra.mxu0 %v883
  %1111 = vmatprep.subr.bf16.mxu0 0
  %1112 = vmatpush1.bf16.msra.mxu0 %v884
  %1113 = vmatprep.subr.bf16.mxu0 0
  %1114 = vmatpush1.bf16.msra.mxu0 0
  %1115 = vmatprep.subr.bf16.mxu0 0
  %1116 = vmatpush1.bf16.msra.mxu0 0
  %1117 = vmatprep.subr.bf16.mxu0 0
  %1118 = vmatpush1.bf16.msra.mxu0 0
  %1119 = vmatprep.subr.bf16.mxu0 0
  %1120 = vmatpush1.bf16.msra.mxu0 0
  %1121 = vmatprep.subr.bf16.mxu0 0
  %1122 = vmatpush1.bf16.msra.mxu0 0
  %1123 = vmatprep.subr.bf16.mxu0 0
  %1124 = vmatpush1.bf16.msra.mxu0 0
  %1125 = vmatprep.subr.bf16.mxu0 0
  %1126 = vmatpush1.bf16.msra.mxu0 0
  %1127 = vmatprep.subr.bf16.mxu0 0
  %1128 = vmatpush1.bf16.msra.mxu0 0
  %1129 = vmatprep.subr.bf16.mxu0 0
  %1130 = vmatpush1.bf16.msra.mxu0 0
  %1131 = vmatprep.subr.bf16.mxu0 0
  %1132 = vmatpush1.bf16.msra.mxu0 0
  %1133 = vmatprep.subr.bf16.mxu0 0
  %1134 = vmatpush1.bf16.msra.mxu0 0
  %1135 = vmatprep.subr.bf16.mxu0 0
  %1136 = vmatpush1.bf16.msra.mxu0 0
  %1137 = vmatprep.subr.bf16.mxu0 0
  %1138 = vmatpush1.bf16.msra.mxu0 0
  %1139 = vmatprep.subr.bf16.mxu0 0
  %1140 = vmatpush1.bf16.msra.mxu0 0
  %1141 = vmatprep.mubr.bf16.mxu0 0
  %1142 = vmatmul.mubr.bf16.gmra.mrb[0].mxu0 %v1107
  %v1143 = vpop.f32.mrb[0].mxu0
  %v1144 = vadd.f32 0.0, %v1143
  %v1145 = vpop.f32.mrb[0].mxu0
  %v1146 = vpop.f32.mrb[0].mxu0
  %v1147 = vpop.f32.mrb[0].mxu0
  %1148 = vdwg.mxu0
  %v1149 = vadd.f32 %v1101, %v1144
  %v1150 = vtanh.pop %v1149
  %v1151 = vmul.f32 %v1150, 0.5
  %v1152 = vadd.f32 %v1151, 0.5
  %v1153 = vmul.f32 %v1152, %v1089
  %1155 = vrot.lane.b32.xlu0 %v1150, 64
  %v1156 = vpop.permute.xlu0 %1155
  %v1158 = vmul.f32 %v1152, %v1156
  %1160 = vrot.lane.b32.xlu0 %v1158, 32
  %v1161 = vpop.permute.xlu0 %1160
  %v1163 = vadd.f32 %v1153, %v1161
  %v1164 = vtanh.pop %v1163
  %1166 = vrot.lane.b32.xlu0 %v1164, 64
  %v1167 = vpop.permute.xlu0 %1166
  %v1169 = vmul.f32 %v1152, %v1167
  %1171 = vrot.lane.b32.xlu0 %v1169, 32
  %v1172 = vpop.permute.xlu0 %1171
  %1174 = vst.msk [vmem:[#allocation3 + $0x18] sm:$0xff] %vm162, %v1172
  %v1175 = vld [vmem:[#allocation2 + $0x20] sm:$0xff]
  %v1176 = vpack.c.bf16 %v1169, %v1169
  %1178 = vrot.lane.b32.xlu0 %v1176, 32
  %v1179 = vpop.permute.xlu0 %1178
  %v1181 = vsel %vm162, %v1179, 0
  %1183 = vmatprep.subr.bf16.mxu0 0
  %1184 = vmatpush1.bf16.msra.mxu0 %v883
  %1185 = vmatprep.subr.bf16.mxu0 0
  %1186 = vmatpush1.bf16.msra.mxu0 %v884
  %1187 = vmatprep.subr.bf16.mxu0 0
  %1188 = vmatpush1.bf16.msra.mxu0 0
  %1189 = vmatprep.subr.bf16.mxu0 0
  %1190 = vmatpush1.bf16.msra.mxu0 0
  %1191 = vmatprep.subr.bf16.mxu0 0
  %1192 = vmatpush1.bf16.msra.mxu0 0
  %1193 = vmatprep.subr.bf16.mxu0 0
  %1194 = vmatpush1.bf16.msra.mxu0 0
  %1195 = vmatprep.subr.bf16.mxu0 0
  %1196 = vmatpush1.bf16.msra.mxu0 0
  %1197 = vmatprep.subr.bf16.mxu0 0
  %1198 = vmatpush1.bf16.msra.mxu0 0
  %1199 = vmatprep.subr.bf16.mxu0 0
  %1200 = vmatpush1.bf16.msra.mxu0 0
  %1201 = vmatprep.subr.bf16.mxu0 0
  %1202 = vmatpush1.bf16.msra.mxu0 0
  %1203 = vmatprep.subr.bf16.mxu0 0
  %1204 = vmatpush1.bf16.msra.mxu0 0
  %1205 = vmatprep.subr.bf16.mxu0 0
  %1206 = vmatpush1.bf16.msra.mxu0 0
  %1207 = vmatprep.subr.bf16.mxu0 0
  %1208 = vmatpush1.bf16.msra.mxu0 0
  %1209 = vmatprep.subr.bf16.mxu0 0
  %1210 = vmatpush1.bf16.msra.mxu0 0
  %1211 = vmatprep.subr.bf16.mxu0 0
  %1212 = vmatpush1.bf16.msra.mxu0 0
  %1213 = vmatprep.subr.bf16.mxu0 0
  %1214 = vmatpush1.bf16.msra.mxu0 0
  %1215 = vmatprep.mubr.bf16.mxu0 0
  %1216 = vmatmul.mubr.bf16.gmra.mrb[0].mxu0 %v1181
  %v1217 = vpop.f32.mrb[0].mxu0
  %v1218 = vadd.f32 0.0, %v1217
  %v1219 = vpop.f32.mrb[0].mxu0
  %v1220 = vpop.f32.mrb[0].mxu0
  %v1221 = vpop.f32.mrb[0].mxu0
  %1222 = vdwg.mxu0
  %v1223 = vadd.f32 %v1175, %v1218
  %v1224 = vtanh.pop %v1223
  %v1225 = vmul.f32 %v1224, 0.5
  %v1226 = vadd.f32 %v1225, 0.5
  %v1227 = vmul.f32 %v1226, %v1163
  %1229 = vrot.lane.b32.xlu0 %v1224, 64
  %v1230 = vpop.permute.xlu0 %1229
  %v1232 = vmul.f32 %v1226, %v1230
  %1234 = vrot.lane.b32.xlu0 %v1232, 32
  %v1235 = vpop.permute.xlu0 %1234
  %v1237 = vadd.f32 %v1227, %v1235
  %v1238 = vtanh.pop %v1237
  %1240 = vrot.lane.b32.xlu0 %v1238, 64
  %v1241 = vpop.permute.xlu0 %1240
  %v1243 = vmul.f32 %v1226, %v1241
  %1245 = vrot.lane.b32.xlu0 %v1243, 32
  %v1246 = vpop.permute.xlu0 %1245
  %1248 = vst.msk [vmem:[#allocation3 + $0x20] sm:$0xff] %vm162, %v1246
  %v1249 = vld [vmem:[#allocation2 + $0x28] sm:$0xff]
  %v1250 = vpack.c.bf16 %v1243, %v1243
  %1252 = vrot.lane.b32.xlu0 %v1250, 32
  %v1253 = vpop.permute.xlu0 %1252
  %v1255 = vsel %vm162, %v1253, 0
  %1257 = vmatprep.subr.bf16.mxu0 0
  %1258 = vmatpush1.bf16.msra.mxu0 %v883
  %1259 = vmatprep.subr.bf16.mxu0 0
  %1260 = vmatpush1.bf16.msra.mxu0 %v884
  %1261 = vmatprep.subr.bf16.mxu0 0
  %1262 = vmatpush1.bf16.msra.mxu0 0
  %1263 = vmatprep.subr.bf16.mxu0 0
  %1264 = vmatpush1.bf16.msra.mxu0 0
  %1265 = vmatprep.subr.bf16.mxu0 0
  %1266 = vmatpush1.bf16.msra.mxu0 0
  %1267 = vmatprep.subr.bf16.mxu0 0
  %1268 = vmatpush1.bf16.msra.mxu0 0
  %1269 = vmatprep.subr.bf16.mxu0 0
  %1270 = vmatpush1.bf16.msra.mxu0 0
  %1271 = vmatprep.subr.bf16.mxu0 0
  %1272 = vmatpush1.bf16.msra.mxu0 0
  %1273 = vmatprep.subr.bf16.mxu0 0
  %1274 = vmatpush1.bf16.msra.mxu0 0
  %1275 = vmatprep.subr.bf16.mxu0 0
  %1276 = vmatpush1.bf16.msra.mxu0 0
  %1277 = vmatprep.subr.bf16.mxu0 0
  %1278 = vmatpush1.bf16.msra.mxu0 0
  %1279 = vmatprep.subr.bf16.mxu0 0
  %1280 = vmatpush1.bf16.msra.mxu0 0
  %1281 = vmatprep.subr.bf16.mxu0 0
  %1282 = vmatpush1.bf16.msra.mxu0 0
  %1283 = vmatprep.subr.bf16.mxu0 0
  %1284 = vmatpush1.bf16.msra.mxu0 0
  %1285 = vmatprep.subr.bf16.mxu0 0
  %1286 = vmatpush1.bf16.msra.mxu0 0
  %1287 = vmatprep.subr.bf16.mxu0 0
  %1288 = vmatpush1.bf16.msra.mxu0 0
  %1289 = vmatprep.mubr.bf16.mxu0 0
  %1290 = vmatmul.mubr.bf16.gmra.mrb[0].mxu0 %v1255
  %v1291 = vpop.f32.mrb[0].mxu0
  %v1292 = vadd.f32 0.0, %v1291
  %v1293 = vpop.f32.mrb[0].mxu0
  %v1294 = vpop.f32.mrb[0].mxu0
  %v1295 = vpop.f32.mrb[0].mxu0
  %1296 = vdwg.mxu0
  %v1297 = vadd.f32 %v1249, %v1292
  %v1298 = vtanh.pop %v1297
  %v1299 = vmul.f32 %v1298, 0.5
  %v1300 = vadd.f32 %v1299, 0.5
  %v1301 = vmul.f32 %v1300, %v1237
  %1303 = vrot.lane.b32.xlu0 %v1298, 64
  %v1304 = vpop.permute.xlu0 %1303
  %v1306 = vmul.f32 %v1300, %v1304
  %1308 = vrot.lane.b32.xlu0 %v1306, 32
  %v1309 = vpop.permute.xlu0 %1308
  %v1311 = vadd.f32 %v1301, %v1309
  %v1312 = vtanh.pop %v1311
  %1314 = vrot.lane.b32.xlu0 %v1312, 64
  %v1315 = vpop.permute.xlu0 %1314
  %v1317 = vmul.f32 %v1300, %v1315
  %1319 = vrot.lane.b32.xlu0 %v1317, 32
  %v1320 = vpop.permute.xlu0 %1319
  %1322 = vst.msk [vmem:[#allocation3 + $0x28] sm:$0xff] %vm162, %v1320
  %v1323 = vld [vmem:[#allocation2 + $0x30] sm:$0xff]
  %v1324 = vpack.c.bf16 %v1317, %v1317
  %1326 = vrot.lane.b32.xlu0 %v1324, 32
  %v1327 = vpop.permute.xlu0 %1326
  %v1329 = vsel %vm162, %v1327, 0
  %1331 = vmatprep.subr.bf16.mxu0 0
  %1332 = vmatpush1.bf16.msra.mxu0 %v883
  %1333 = vmatprep.subr.bf16.mxu0 0
  %1334 = vmatpush1.bf16.msra.mxu0 %v884
  %1335 = vmatprep.subr.bf16.mxu0 0
  %1336 = vmatpush1.bf16.msra.mxu0 0
  %1337 = vmatprep.subr.bf16.mxu0 0
  %1338 = vmatpush1.bf16.msra.mxu0 0
  %1339 = vmatprep.subr.bf16.mxu0 0
  %1340 = vmatpush1.bf16.msra.mxu0 0
  %1341 = vmatprep.subr.bf16.mxu0 0
  %1342 = vmatpush1.bf16.msra.mxu0 0
  %1343 = vmatprep.subr.bf16.mxu0 0
  %1344 = vmatpush1.bf16.msra.mxu0 0
  %1345 = vmatprep.subr.bf16.mxu0 0
  %1346 = vmatpush1.bf16.msra.mxu0 0
  %1347 = vmatprep.subr.bf16.mxu0 0
  %1348 = vmatpush1.bf16.msra.mxu0 0
  %1349 = vmatprep.subr.bf16.mxu0 0
  %1350 = vmatpush1.bf16.msra.mxu0 0
  %1351 = vmatprep.subr.bf16.mxu0 0
  %1352 = vmatpush1.bf16.msra.mxu0 0
  %1353 = vmatprep.subr.bf16.mxu0 0
  %1354 = vmatpush1.bf16.msra.mxu0 0
  %1355 = vmatprep.subr.bf16.mxu0 0
  %1356 = vmatpush1.bf16.msra.mxu0 0
  %1357 = vmatprep.subr.bf16.mxu0 0
  %1358 = vmatpush1.bf16.msra.mxu0 0
  %1359 = vmatprep.subr.bf16.mxu0 0
  %1360 = vmatpush1.bf16.msra.mxu0 0
  %1361 = vmatprep.subr.bf16.mxu0 0
  %1362 = vmatpush1.bf16.msra.mxu0 0
  %1363 = vmatprep.mubr.bf16.mxu0 0
  %1364 = vmatmul.mubr.bf16.gmra.mrb[0].mxu0 %v1329
  %v1365 = vpop.f32.mrb[0].mxu0
  %v1366 = vadd.f32 0.0, %v1365
  %v1367 = vpop.f32.mrb[0].mxu0
  %v1368 = vpop.f32.mrb[0].mxu0
  %v1369 = vpop.f32.mrb[0].mxu0
  %1370 = vdwg.mxu0
  %v1371 = vadd.f32 %v1323, %v1366
  %v1372 = vtanh.pop %v1371
  %v1373 = vmul.f32 %v1372, 0.5
  %v1374 = vadd.f32 %v1373, 0.5
  %v1375 = vmul.f32 %v1374, %v1311
  %1377 = vrot.lane.b32.xlu0 %v1372, 64
  %v1378 = vpop.permute.xlu0 %1377
  %v1380 = vmul.f32 %v1374, %v1378
  %1382 = vrot.lane.b32.xlu0 %v1380, 32
  %v1383 = vpop.permute.xlu0 %1382
  %v1385 = vadd.f32 %v1375, %v1383
  %v1386 = vtanh.pop %v1385
  %1388 = vrot.lane.b32.xlu0 %v1386, 64
  %v1389 = vpop.permute.xlu0 %1388
  %v1391 = vmul.f32 %v1374, %v1389
  %1393 = vrot.lane.b32.xlu0 %v1391, 32
  %v1394 = vpop.permute.xlu0 %1393
  %1396 = vst.msk [vmem:[#allocation3 + $0x30] sm:$0xff] %vm162, %v1394
  %v1397 = vld [vmem:[#allocation2 + $0x38] sm:$0xff]
  %v1398 = vpack.c.bf16 %v1391, %v1391
  %1400 = vrot.lane.b32.xlu0 %v1398, 32
  %v1401 = vpop.permute.xlu0 %1400
  %v1403 = vsel %vm162, %v1401, 0
  %1405 = vmatprep.subr.bf16.mxu0 0
  %1406 = vmatpush1.bf16.msra.mxu0 %v883
  %1407 = vmatprep.subr.bf16.mxu0 0
  %1408 = vmatpush1.bf16.msra.mxu0 %v884
  %1409 = vmatprep.subr.bf16.mxu0 0
  %1410 = vmatpush1.bf16.msra.mxu0 0
  %1411 = vmatprep.subr.bf16.mxu0 0
  %1412 = vmatpush1.bf16.msra.mxu0 0
  %1413 = vmatprep.subr.bf16.mxu0 0
  %1414 = vmatpush1.bf16.msra.mxu0 0
  %1415 = vmatprep.subr.bf16.mxu0 0
  %1416 = vmatpush1.bf16.msra.mxu0 0
  %1417 = vmatprep.subr.bf16.mxu0 0
  %1418 = vmatpush1.bf16.msra.mxu0 0
  %1419 = vmatprep.subr.bf16.mxu0 0
  %1420 = vmatpush1.bf16.msra.mxu0 0
  %1421 = vmatprep.subr.bf16.mxu0 0
  %1422 = vmatpush1.bf16.msra.mxu0 0
  %1423 = vmatprep.subr.bf16.mxu0 0
  %1424 = vmatpush1.bf16.msra.mxu0 0
  %1425 = vmatprep.subr.bf16.mxu0 0
  %1426 = vmatpush1.bf16.msra.mxu0 0
  %1427 = vmatprep.subr.bf16.mxu0 0
  %1428 = vmatpush1.bf16.msra.mxu0 0
  %1429 = vmatprep.subr.bf16.mxu0 0
  %1430 = vmatpush1.bf16.msra.mxu0 0
  %1431 = vmatprep.subr.bf16.mxu0 0
  %1432 = vmatpush1.bf16.msra.mxu0 0
  %1433 = vmatprep.subr.bf16.mxu0 0
  %1434 = vmatpush1.bf16.msra.mxu0 0
  %1435 = vmatprep.subr.bf16.mxu0 0
  %1436 = vmatpush1.bf16.msra.mxu0 0
  %1437 = vmatprep.mubr.bf16.mxu0 0
  %1438 = vmatmul.mubr.bf16.gmra.mrb[0].mxu0 %v1403
  %v1439 = vpop.f32.mrb[0].mxu0
  %v1440 = vadd.f32 0.0, %v1439
  %v1441 = vpop.f32.mrb[0].mxu0
  %v1442 = vpop.f32.mrb[0].mxu0
  %v1443 = vpop.f32.mrb[0].mxu0
  %1444 = vdwg.mxu0
  %v1445 = vadd.f32 %v1397, %v1440
  %v1446 = vtanh.pop %v1445
  %v1447 = vmul.f32 %v1446, 0.5
  %v1448 = vadd.f32 %v1447, 0.5
  %v1449 = vmul.f32 %v1448, %v1385
  %1451 = vrot.lane.b32.xlu0 %v1446, 64
  %v1452 = vpop.permute.xlu0 %1451
  %v1454 = vmul.f32 %v1448, %v1452
  %1456 = vrot.lane.b32.xlu0 %v1454, 32
  %v1457 = vpop.permute.xlu0 %1456
  %v1459 = vadd.f32 %v1449, %v1457
  %v1460 = vtanh.pop %v1459
  %1462 = vrot.lane.b32.xlu0 %v1460, 64
  %v1463 = vpop.permute.xlu0 %1462
  %v1465 = vmul.f32 %v1448, %v1463
  %1467 = vrot.lane.b32.xlu0 %v1465, 32
  %v1468 = vpop.permute.xlu0 %1467
  %1470 = vst.msk [vmem:[#allocation3 + $0x38] sm:$0xff] %vm162, %v1468
  %v1471 = vld [vmem:[#allocation3] sm:$0xff]
  %v1472 = vld [vmem:[#allocation3 + $0x8] sm:$0xff]
  %v1473 = vld [vmem:[#allocation3 + $0x10] sm:$0xff]
  %v1474 = vld [vmem:[#allocation3 + $0x18] sm:$0xff]
  %v1475 = vld [vmem:[#allocation3 + $0x20] sm:$0xff]
  %v1476 = vld [vmem:[#allocation3 + $0x28] sm:$0xff]
  %v1477 = vld [vmem:[#allocation3 + $0x30] sm:$0xff]
  %v1478 = vld [vmem:[#allocation3 + $0x38] sm:$0xff]
  %v1479 = vld [vmem:[%s7] sm:$0xff]
  %v1480 = vld [vmem:[%s7 + $0x8] sm:$0xff]
  %v1481 = vld [vmem:[%s7 + $0x10] sm:$0xff]
  %v1482 = vld [vmem:[%s7 + $0x18] sm:$0xff]
  %v1483 = vld [vmem:[#allocation4] sm:$0x1]
  %v1485 = vlaneseq
  %v1486 = vshrl.u32 %v1485, 7
  %v1487 = vsub.s32 0, %v1486
  %v1488 = vrot.slane %v1483, %v1487
  %v1491 = vsel %vm162, %v1471, 0
  %v1494 = vsel %vm162, %v1472, 0
  %v1497 = vsel %vm162, %v1473, 0
  %v1500 = vsel %vm162, %v1474, 0
  %v1503 = vsel %vm162, %v1475, 0
  %v1506 = vsel %vm162, %v1476, 0
  %v1509 = vsel %vm162, %v1477, 0
  %v1512 = vsel %vm162, %v1478, 0
  %1514 = vmatprep.subr.mxu0 0.0
  %1515 = vmatpush1.msra.mxu0 %v1479
  %1516 = vmatprep.subr.mxu0 0.0
  %1517 = vmatpush1.msra.mxu0 %v1480
  %1518 = vmatprep.subr.mxu0 0.0
  %1519 = vmatpush1.msra.mxu0 %v1481
  %1520 = vmatprep.subr.mxu0 0.0
  %1521 = vmatpush1.msra.mxu0 %v1482
  %1522 = vmatprep.subr.mxu0 0.0
  %1523 = vmatpush1.msra.mxu0 0.0
  %1524 = vmatprep.subr.mxu0 0.0
  %1525 = vmatpush1.msra.mxu0 0.0
  %1526 = vmatprep.subr.mxu0 0.0
  %1527 = vmatpush1.msra.mxu0 0.0
  %1528 = vmatprep.subr.mxu0 0.0
  %1529 = vmatpush1.msra.mxu0 0.0
  %1530 = vmatprep.subr.mxu0 0.0
  %1531 = vmatpush1.msra.mxu0 0.0
  %1532 = vmatprep.subr.mxu0 0.0
  %1533 = vmatpush1.msra.mxu0 0.0
  %1534 = vmatprep.subr.mxu0 0.0
  %1535 = vmatpush1.msra.mxu0 0.0
  %1536 = vmatprep.subr.mxu0 0.0
  %1537 = vmatpush1.msra.mxu0 0.0
  %1538 = vmatprep.subr.mxu0 0.0
  %1539 = vmatpush1.msra.mxu0 0.0
  %1540 = vmatprep.subr.mxu0 0.0
  %1541 = vmatpush1.msra.mxu0 0.0
  %1542 = vmatprep.subr.mxu0 0.0
  %1543 = vmatpush1.msra.mxu0 0.0
  %1544 = vmatprep.subr.mxu0 0.0
  %1545 = vmatpush1.msra.mxu0 0.0
  %1546 = vmatprep.subr.mxu0 0.0
  %1547 = vmatpush1.msra.mxu0 0.0
  %1548 = vmatprep.subr.mxu0 0.0
  %1549 = vmatpush1.msra.mxu0 0.0
  %1550 = vmatprep.subr.mxu0 0.0
  %1551 = vmatpush1.msra.mxu0 0.0
  %1552 = vmatprep.subr.mxu0 0.0
  %1553 = vmatpush1.msra.mxu0 0.0
  %1554 = vmatprep.subr.mxu0 0.0
  %1555 = vmatpush1.msra.mxu0 0.0
  %1556 = vmatprep.subr.mxu0 0.0
  %1557 = vmatpush1.msra.mxu0 0.0
  %1558 = vmatprep.subr.mxu0 0.0
  %1559 = vmatpush1.msra.mxu0 0.0
  %1560 = vmatprep.subr.mxu0 0.0
  %1561 = vmatpush1.msra.mxu0 0.0
  %1562 = vmatprep.subr.mxu0 0.0
  %1563 = vmatpush1.msra.mxu0 0.0
  %1564 = vmatprep.subr.mxu0 0.0
  %1565 = vmatpush1.msra.mxu0 0.0
  %1566 = vmatprep.subr.mxu0 0.0
  %1567 = vmatpush1.msra.mxu0 0.0
  %1568 = vmatprep.subr.mxu0 0.0
  %1569 = vmatpush1.msra.mxu0 0.0
  %1570 = vmatprep.subr.mxu0 0.0
  %1571 = vmatpush1.msra.mxu0 0.0
  %1572 = vmatprep.subr.mxu0 0.0
  %1573 = vmatpush1.msra.mxu0 0.0
  %1574 = vmatprep.subr.mxu0 0.0
  %1575 = vmatpush1.msra.mxu0 0.0
  %1576 = vmatprep.subr.mxu0 0.0
  %1577 = vmatpush1.msra.mxu0 0.0
  %1578 = vmatprep.mubr.f32.mxu0 0.0
  %1579 = vmatmul.mubr.f32.gmra.mrb[0].mxu0 %v1491
  %v1580 = vpop.f32.mrb[0].mxu0
  %v1581 = vadd.f32 %v1488, %v1580
  %v1582 = vpop.f32.mrb[0].mxu0
  %1583 = vmatprep.mubr.f32.mxu0 0.0
  %1584 = vmatmul.mubr.f32.gmra.mrb[0].mxu0 %v1494
  %v1585 = vpop.f32.mrb[0].mxu0
  %v1586 = vadd.f32 %v1488, %v1585
  %v1587 = vpop.f32.mrb[0].mxu0
  %1588 = vmatprep.mubr.f32.mxu0 0.0
  %1589 = vmatmul.mubr.f32.gmra.mrb[0].mxu0 %v1497
  %v1590 = vpop.f32.mrb[0].mxu0
  %v1591 = vadd.f32 %v1488, %v1590
  %v1592 = vpop.f32.mrb[0].mxu0
  %1593 = vmatprep.mubr.f32.mxu0 0.0
  %1594 = vmatmul.mubr.f32.gmra.mrb[0].mxu0 %v1500
  %v1595 = vpop.f32.mrb[0].mxu0
  %v1596 = vadd.f32 %v1488, %v1595
  %v1597 = vpop.f32.mrb[0].mxu0
  %1598 = vmatprep.mubr.f32.mxu0 0.0
  %1599 = vmatmul.mubr.f32.gmra.mrb[0].mxu0 %v1503
  %v1600 = vpop.f32.mrb[0].mxu0
  %v1601 = vadd.f32 %v1488, %v1600
  %v1602 = vpop.f32.mrb[0].mxu0
  %1603 = vmatprep.mubr.f32.mxu0 0.0
  %1604 = vmatmul.mubr.f32.gmra.mrb[0].mxu0 %v1506
  %v1605 = vpop.f32.mrb[0].mxu0
  %v1606 = vadd.f32 %v1488, %v1605
  %v1607 = vpop.f32.mrb[0].mxu0
  %1608 = vmatprep.mubr.f32.mxu0 0.0
  %1609 = vmatmul.mubr.f32.gmra.mrb[0].mxu0 %v1509
  %v1610 = vpop.f32.mrb[0].mxu0
  %v1611 = vadd.f32 %v1488, %v1610
  %v1612 = vpop.f32.mrb[0].mxu0
  %1613 = vmatprep.mubr.f32.mxu0 0.0
  %1614 = vmatmul.mubr.f32.gmra.mrb[0].mxu0 %v1512
  %v1615 = vpop.f32.mrb[0].mxu0
  %v1616 = vadd.f32 %v1488, %v1615
  %v1617 = vpop.f32.mrb[0].mxu0
  %1618 = vdwg.mxu0
  %v1619 = vmax.f32 %v1581, 0.0
  %v1620 = vmax.f32 %v1586, 0.0
  %v1621 = vmax.f32 %v1591, 0.0
  %v1622 = vmax.f32 %v1596, 0.0
  %v1623 = vmax.f32 %v1601, 0.0
  %v1624 = vmax.f32 %v1606, 0.0
  %v1625 = vmax.f32 %v1611, 0.0
  %v1626 = vmax.f32 %v1616, 0.0
  %vm1627 = vcmask 7168
  %1628 = vst.msk [vmem:[%s9] sm:$0xff] %vm1627, %v1619
  %1629 = vst.msk [vmem:[%s9 + $0x8] sm:$0xff] %vm1627, %v1620
  %1630 = vst.msk [vmem:[%s9 + $0x10] sm:$0xff] %vm1627, %v1621
  %1631 = vst.msk [vmem:[%s9 + $0x18] sm:$0xff] %vm1627, %v1622
  %1632 = vst.msk [vmem:[%s9 + $0x20] sm:$0xff] %vm1627, %v1623
  %1633 = vst.msk [vmem:[%s9 + $0x28] sm:$0xff] %vm1627, %v1624
  %1634 = vst.msk [vmem:[%s9 + $0x30] sm:$0xff] %vm1627, %v1625
  %1635 = vst.msk [vmem:[%s9 + $0x38] sm:$0xff] %vm1627, %v1626
  // Predicated region
  $region38: #{lstm_predictor_forward.1} parent=0 // pred_check
    _
  $region39: #{lstm_predictor_forward.1} parent=0 // pred_check_branch
    %1637 = sbr.rel (0) target = $region41
  $region40: #{lstm_predictor_forward.1} parent=0 // pred_region
    _
  $region41: #{lstm_predictor_forward.1} parent=0 // pred_fallthru
    _
  // Predicated region
  $region42: #{lstm_predictor_forward.1} parent=0 // pred_check
    _
  $region43: #{lstm_predictor_forward.1} parent=0 // pred_check_branch
    %1639 = sbr.rel (0) target = $region45
  $region44: #{lstm_predictor_forward.1} parent=0 // pred_region
    _
  $region45: #{lstm_predictor_forward.1} parent=0 // pred_fallthru
    _

</llo_original>
